<compile_context>
chip_gen: v7x
topology: tpu7x:2x2x1
jax: 0.10.0
libtpu: 0.0.40
codegen_flags: <defaults>
</compile_context>

<pallas_src>
import jax
import jax.numpy as jnp
from jax.experimental import pallas as pl
from jax.experimental.pallas import tpu as pltpu

_HID_PAD = 128  # hidden dim (6) zero-padded to one full lane width


def _round_up(x, m):
    return ((x + m - 1) // m) * m


def _mlp_kernel(x_ref, w1_ref, b1_ref, w2_ref, b2_ref, o_ref):
    """x:[tb,F] VMEM; w1:[F,128], b1:[1,128], w2:[128,1] VMEM; b2:[1] SMEM; o:[tb,1]."""
    # Layer 1 on the MXU: batch rows on sublanes, padded hidden dim on lanes.
    h = jnp.dot(x_ref[...], w1_ref[...],
                preferred_element_type=jnp.float32,
                precision=jax.lax.Precision.HIGHEST)
    # Bias + ReLU: one lane-dense VPU pass over (tb, 128).
    h = jnp.maximum(h + b1_ref[...], 0.0)
    # Layer 2 on the MXU; zero rows of w2 kill the padded hidden columns.
    y = jnp.dot(h, w2_ref[...],
                preferred_element_type=jnp.float32,
                precision=jax.lax.Precision.HIGHEST)
    o_ref[...] = (y + b2_ref[0]).astype(o_ref.dtype)


def insurance_network_forward(x, w1, b1, w2, b2, *, tile_batch=4096):
    """x: [N, F] float32. Returns [N, 1] float32 (same as the PyTorch module)."""
    N, F = x.shape
    H = w1.shape[1]
    assert w1.shape[0] == F and H <= _HID_PAD

    if N == 0:  # guard the empty-batch edge case
        return jnp.zeros((0, 1), jnp.float32)

    # --- batch tile selection --------------------------------------------------
    n8 = _round_up(N, 8)                         # sublane granularity
    tb = _round_up(min(tile_batch, n8), 8)
    if tb >= n8 and n8 >= 16:
        tb = _round_up((n8 + 1) // 2, 8)         # >=2 grid steps -> both v7x cores busy
    n_pad = _round_up(n8, tb)
    grid = (n_pad // tb,)

    xf = x.astype(jnp.float32)
    if n_pad != N:
        # TODO(synk): only ragged batches pay this extra copy; tile-aligned
        # batches stream straight from the caller's buffer.
        xf = jnp.pad(xf, ((0, n_pad - N), (0, 0)))

    # --- tiny parameters, zero-padded to (8,128)-friendly shapes ---------------
    w1p = jnp.zeros((F, _HID_PAD), jnp.float32).at[:, :H].set(w1.astype(jnp.float32))
    b1p = jnp.zeros((1, _HID_PAD), jnp.float32).at[:, :H].set(
        b1.reshape(1, H).astype(jnp.float32))
    w2p = jnp.zeros((_HID_PAD, 1), jnp.float32).at[:H, :].set(
        w2.reshape(H, 1).astype(jnp.float32))
    b2f = b2.reshape(-1).astype(jnp.float32)            # [1], lives in SMEM

    y_pad = pl.pallas_call(
        _mlp_kernel,
        out_shape=jax.ShapeDtypeStruct((n_pad, 1), jnp.float32),
        grid=grid,
        in_specs=[
            # x: contiguous row-major batch tile, all features (F == full dim).
            pl.BlockSpec((tb, F), lambda i: (i, 0)),
            # Parameters: constant block index -> fetched once, stay resident.
            pl.BlockSpec((F, _HID_PAD), lambda i: (0, 0)),        # w1 padded
            pl.BlockSpec((1, _HID_PAD), lambda i: (0, 0)),        # b1 padded
            pl.BlockSpec((_HID_PAD, 1), lambda i: (0, 0)),        # w2 padded
            pl.BlockSpec(memory_space=pltpu.MemorySpace.SMEM),    # b2 scalar
        ],
        out_specs=pl.BlockSpec((tb, 1), lambda i: (i, 0)),
        compiler_params=pltpu.CompilerParams(
            dimension_semantics=("parallel",),     # megacore-shard the batch axis
            vmem_limit_bytes=32 * 1024 * 1024,
        ),
        cost_estimate=pl.CostEstimate(
            flops=2 * n_pad * (F * H + H),
            transcendentals=0,
            bytes_accessed=n_pad * (F + 1) * 4 + (F + 2) * _HID_PAD * 4,
        ),
    )(xf, w1p, b1p, w2p, b2f)

    # Strip padded rows; restore the PyTorch (N, 1) output shape.
    return y_pad[:N] if n_pad != N else y_pad


def init_params(input_size, hidden=6, out=1, seed=0):
    """Deterministic init mimicking PyTorch nn.Linear default:
    uniform(-1/sqrt(fan_in), +1/sqrt(fan_in)) for weight and bias."""
    key = jax.random.PRNGKey(seed)
    k1, k2, k3, k4 = jax.random.split(key, 4)
    bound1 = 1.0 / jnp.sqrt(jnp.float32(input_size))
    bound2 = 1.0 / jnp.sqrt(jnp.float32(hidden))
    # stored as [in, out]: forward is x @ W (equivalent to torch x @ W.T)
    w1 = jax.random.uniform(k1, (input_size, hidden), jnp.float32, -bound1, bound1)
    b1 = jax.random.uniform(k2, (hidden,), jnp.float32, -bound1, bound1)
    w2 = jax.random.uniform(k3, (hidden, out), jnp.float32, -bound2, bound2)
    b2 = jax.random.uniform(k4, (out,), jnp.float32, -bound2, bound2)
    return w1, b1, w2, b2


def reference_forward(x, w1, b1, w2, b2):
    h = jnp.maximum(
        jnp.dot(x, w1, precision=jax.lax.Precision.HIGHEST) + b1, 0.0)
    return jnp.dot(h, w2, precision=jax.lax.Precision.HIGHEST) + b2


if __name__ == "__main__":
    # Small tabular shapes consistent with the module (insurance features).
    N = 37   # ragged batch -> exercises padding and the 2-step grid path
    F = 8    # input_size (number of features)
    key = jax.random.PRNGKey(0)
    x = jax.random.normal(key, (N, F), jnp.float32)

    w1, b1, w2, b2 = init_params(F)

    y = jax.block_until_ready(insurance_network_forward(x, w1, b1, w2, b2))

    y_ref = reference_forward(x, w1, b1, w2, b2)
    assert y.shape == (N, 1)
    assert jnp.allclose(y, y_ref, atol=1e-4, rtol=1e-4), "mismatch vs reference"

    print("KERNEL_OK")
</pallas_src>

<mosaic_0001>
module attributes {stable_mosaic.version = 11 : i64} {
  func.func @_mlp_kernel(%arg0: i32, %arg1: memref<24x8xf32, #tpu.memory_space<vmem>>, %arg2: memref<8x128xf32, #tpu.memory_space<vmem>>, %arg3: memref<1x128xf32, #tpu.memory_space<vmem>>, %arg4: memref<128x1xf32, #tpu.memory_space<vmem>>, %arg5: memref<1xf32, #tpu.memory_space<smem>>, %arg6: memref<24x1xf32, #tpu.memory_space<vmem>>) attributes {dimension_semantics = [#tpu.dimension_semantics<parallel>], iteration_bounds = array<i64: 2>, scalar_prefetch = 0 : i64, scratch_operands = 0 : i64, tpu.core_type = #tpu.core_type<tc>, window_params = [{transform_indices = @transform_0, window_bounds = array<i64: 24, 8>}, {pipeline_mode = #tpu.pipeline_mode<synchronous>, transform_indices = @transform_1, window_bounds = array<i64: 8, 128>}, {pipeline_mode = #tpu.pipeline_mode<synchronous>, transform_indices = @transform_2, window_bounds = array<i64: 1, 128>}, {pipeline_mode = #tpu.pipeline_mode<synchronous>, transform_indices = @transform_3, window_bounds = array<i64: 128, 1>}, {transform_indices = @transform_4, window_bounds = array<i64: 1>}, {transform_indices = @transform_5, window_bounds = array<i64: 24, 1>}]} {
    %c0 = arith.constant 0 : index
    %c0_0 = arith.constant 0 : index
    %0 = vector.load %arg1[%c0, %c0_0] : memref<24x8xf32, #tpu.memory_space<vmem>>, vector<24x8xf32>
    %c0_1 = arith.constant 0 : index
    %c0_2 = arith.constant 0 : index
    %1 = vector.load %arg2[%c0_1, %c0_2] : memref<8x128xf32, #tpu.memory_space<vmem>>, vector<8x128xf32>
    %cst = arith.constant dense<0.000000e+00> : vector<24x128xf32>
    %2 = tpu.matmul %0, %1, %cst {dimension_numbers = #tpu.dot_dimension_numbers<[1], [0], [0], [1], [0, 0, 1, 1], [], []>, precision = #tpu.contract_precision<fp32>} : vector<24x8xf32>, vector<8x128xf32>, vector<24x128xf32> -> vector<24x128xf32>
    %c0_3 = arith.constant 0 : index
    %c0_4 = arith.constant 0 : index
    %3 = vector.load %arg3[%c0_3, %c0_4] : memref<1x128xf32, #tpu.memory_space<vmem>>, vector<1x128xf32>
    %4 = vector.broadcast %3 : vector<1x128xf32> to vector<24x128xf32>
    %5 = arith.addf %2, %4 : vector<24x128xf32>
    %cst_5 = arith.constant 0.000000e+00 : f32
    %6 = vector.broadcast %cst_5 : f32 to vector<24x128xf32>
    %7 = arith.maximumf %5, %6 : vector<24x128xf32>
    %c0_6 = arith.constant 0 : index
    %c0_7 = arith.constant 0 : index
    %8 = vector.load %arg4[%c0_6, %c0_7] : memref<128x1xf32, #tpu.memory_space<vmem>>, vector<128x1xf32>
    %cst_8 = arith.constant dense<0.000000e+00> : vector<24x1xf32>
    %9 = tpu.matmul %7, %8, %cst_8 {dimension_numbers = #tpu.dot_dimension_numbers<[1], [0], [0], [1], [0, 0, 1, 1], [], []>, precision = #tpu.contract_precision<fp32>} : vector<24x128xf32>, vector<128x1xf32>, vector<24x1xf32> -> vector<24x1xf32>
    %c0_9 = arith.constant 0 : index
    %10 = memref.load %arg5[%c0_9] : memref<1xf32, #tpu.memory_space<smem>>
    %11 = vector.broadcast %10 : f32 to vector<24x1xf32>
    %12 = arith.addf %9, %11 : vector<24x1xf32>
    %c0_10 = arith.constant 0 : index
    %c0_11 = arith.constant 0 : index
    %13 = vector.load %arg6[%c0_10, %c0_11] : memref<24x1xf32, #tpu.memory_space<vmem>>, vector<24x1xf32>
    tpu.vector_store %arg6[%c0_10, %c0_11], %12 {strides = array<i32>} : memref<24x1xf32, #tpu.memory_space<vmem>>, vector<24x1xf32>,
    return
  }
  func.func @transform_0(%arg0: i32) -> (i32, i32) {
    %c0_i32 = arith.constant 0 : i32
    %c0_i32_0 = arith.constant 0 : i32
    return %arg0, %c0_i32 : i32, i32
  }
  func.func @transform_1(%arg0: i32) -> (i32, i32) {
    %c0_i32 = arith.constant 0 : i32
    %c0_i32_0 = arith.constant 0 : i32
    %c0_i32_1 = arith.constant 0 : i32
    return %c0_i32, %c0_i32_0 : i32, i32
  }
  func.func @transform_2(%arg0: i32) -> (i32, i32) {
    %c0_i32 = arith.constant 0 : i32
    %c0_i32_0 = arith.constant 0 : i32
    %c0_i32_1 = arith.constant 0 : i32
    return %c0_i32, %c0_i32_0 : i32, i32
  }
  func.func @transform_3(%arg0: i32) -> (i32, i32) {
    %c0_i32 = arith.constant 0 : i32
    %c0_i32_0 = arith.constant 0 : i32
    %c0_i32_1 = arith.constant 0 : i32
    return %c0_i32, %c0_i32_0 : i32, i32
  }
  func.func @transform_4(%arg0: i32) -> i32 {
    %c0_i32 = arith.constant 0 : i32
    %c0_i32_0 = arith.constant 0 : i32
    return %c0_i32 : i32
  }
  func.func @transform_5(%arg0: i32) -> (i32, i32) {
    %c0_i32 = arith.constant 0 : i32
    %c0_i32_0 = arith.constant 0 : i32
    return %arg0, %c0_i32 : i32, i32
  }
}

</mosaic_0001>

<llo_original>
// kernel: tpu_custom_call.1
$region0: #{tpu_custom_call.1}
  #allocation0 [shape = 'u32[]', space=smem, size = 0x4, offset = 0x4, fixed_abs, tag = 'smem constant byte address 0x4 - core index']
  #allocation1 [shape = 'u32[144,128]{1,0:T(1,128)}', space=vmem, size = 0x12000, scoped, tag = 'internal scratch']
  #allocation2 [shape = 'f32[1]{0:T(128)S(6)}', space=smem, size = 0x200, scoped, tag = 'scoped memory for tpu_custom_call.1']
  %s0 = inlined_call_operand.vmem [shape: f32[48,8], index: 0, kind: input, shape index: {}]
  %s1 = inlined_call_operand.vmem [shape: f32[8,128], index: 1, kind: input, shape index: {}]
  %s2 = inlined_call_operand.vmem [shape: f32[1,128], index: 2, kind: input, shape index: {}]
  %s3 = inlined_call_operand.vmem [shape: f32[128,1], index: 3, kind: input, shape index: {}]
  %s4 = inlined_call_operand.<no memory space> [shape: f32[1], index: 4, kind: input, shape index: {}]
  %s5 = inlined_call_operand.vmem [shape: f32[48,1], index: 5, kind: output, shape index: {}]
  %s6 = sld [smem:[#allocation0]]
  $region53: #{tpu_custom_call.1} parent=0
    _
  %s8 = ssub.s32 1, %s6
  %s9 = scalar_select 0, %s8, %s6
  %10 = sst [smem:[#allocation2]] %s4
  loop: start=0, step=1, limit=4
  $region2: #{tpu_custom_call.1} parent=0 // loop_pre_header
    _
  $region3: #{tpu_custom_call.1} parent=0 // loop_header
    %s12 = sphi 0, %s16
    %p13 = scmp.ge.s32.totalorder %s12, 4
    %s22 = sphi 0, %s24
    %s25 = sphi 0, %s22
    %s26 = sphi 0, %s25
    %s42 = sphi 0, %s26
    %s46 = sphi 0, %s46
    %s48 = sphi 0, %s46
    %s49 = sphi 0, %s48
    %s63 = sphi 0, %s49
    %s67 = sphi 0, %s67
    %s69 = sphi 0, %s67
    %s70 = sphi 0, %s69
    %s84 = sphi 0, %s70
    %s88 = sphi 0, %s88
    %s90 = sphi 0, %s88
    %s91 = sphi 0, %s90
    %s105 = sphi 0, %s91
    %s109 = sphi 0, %s109
    %s111 = sphi 0, %s109
    %s112 = sphi 0, %s111
    %s126 = sphi 0, %s112
    %s132 = sphi 0, %s134
    %s135 = sphi 0, %s132
    %s136 = sphi 0, %s135
    %s152 = sphi 0, %s136
  $region4: #{tpu_custom_call.1} parent=0 // loop_header_branch
    %15 = sbr.rel (%p13) target = $region8
  $region5: #{tpu_custom_call.1} parent=0 // loop_body
    %s17 = ssub.s32 %s12, 1
    %s18 = ssub.s32 %s12, 2
    %s19 = sadd.s32 %s12, 1
    %s20 = ssub.s32 %s12, %s19
    %p21 = scmp.eq.s32.totalorder %s20, 0
    %s23 = sadd.s32 %s22, 1
    %s24 = scalar_select %p21, %s22, %s23
    %p27 = pneg %p21
    %p28 = scmp.eq.s32.totalorder %s12, 1
    %p29 = por %p27, %p28
    %p30 = scmp.ne.s32.totalorder %s22, %s25
    %p31 = scmp.eq.s32.totalorder %s12, 0
    %p32 = por %p30, %p31
    %p33 = scmp.ne.s32.totalorder %s22, %s25
    %p34 = scmp.eq.s32.totalorder %s17, 1
    %p35 = por %p33, %p34
    %p36 = scmp.ne.s32.totalorder %s25, %s26
    %p37 = scmp.eq.s32.totalorder %s17, 0
    %p38 = por %p36, %p37
    %p39 = scmp.ne.s32.totalorder %s25, %s26
    %p40 = scmp.eq.s32.totalorder %s18, 1
    %p41 = por %p39, %p40
    %p43 = scmp.ne.s32.totalorder %s26, %s42
    %p44 = scmp.eq.s32.totalorder %s18, 0
    %p45 = por %p43, %p44
    %s47 = sadd.s32 %s46, 1
    %p50 = scmp.eq.s32.totalorder %s12, 1
    %p51 = scmp.ne.s32.totalorder %s46, %s48
    %p52 = scmp.eq.s32.totalorder %s12, 0
    %p53 = por %p51, %p52
    %p54 = scmp.ne.s32.totalorder %s46, %s48
    %p55 = scmp.eq.s32.totalorder %s17, 1
    %p56 = por %p54, %p55
    %p57 = scmp.ne.s32.totalorder %s48, %s49
    %p58 = scmp.eq.s32.totalorder %s17, 0
    %p59 = por %p57, %p58
    %p60 = scmp.ne.s32.totalorder %s48, %s49
    %p61 = scmp.eq.s32.totalorder %s18, 1
    %p62 = por %p60, %p61
    %p64 = scmp.ne.s32.totalorder %s49, %s63
    %p65 = scmp.eq.s32.totalorder %s18, 0
    %p66 = por %p64, %p65
    %s68 = sadd.s32 %s67, 1
    %p71 = scmp.eq.s32.totalorder %s12, 1
    %p72 = scmp.ne.s32.totalorder %s67, %s69
    %p73 = scmp.eq.s32.totalorder %s12, 0
    %p74 = por %p72, %p73
    %p75 = scmp.ne.s32.totalorder %s67, %s69
    %p76 = scmp.eq.s32.totalorder %s17, 1
    %p77 = por %p75, %p76
    %p78 = scmp.ne.s32.totalorder %s69, %s70
    %p79 = scmp.eq.s32.totalorder %s17, 0
    %p80 = por %p78, %p79
    %p81 = scmp.ne.s32.totalorder %s69, %s70
    %p82 = scmp.eq.s32.totalorder %s18, 1
    %p83 = por %p81, %p82
    %p85 = scmp.ne.s32.totalorder %s70, %s84
    %p86 = scmp.eq.s32.totalorder %s18, 0
    %p87 = por %p85, %p86
    %s89 = sadd.s32 %s88, 1
    %p92 = scmp.eq.s32.totalorder %s12, 1
    %p93 = scmp.ne.s32.totalorder %s88, %s90
    %p94 = scmp.eq.s32.totalorder %s12, 0
    %p95 = por %p93, %p94
    %p96 = scmp.ne.s32.totalorder %s88, %s90
    %p97 = scmp.eq.s32.totalorder %s17, 1
    %p98 = por %p96, %p97
    %p99 = scmp.ne.s32.totalorder %s90, %s91
    %p100 = scmp.eq.s32.totalorder %s17, 0
    %p101 = por %p99, %p100
    %p102 = scmp.ne.s32.totalorder %s90, %s91
    %p103 = scmp.eq.s32.totalorder %s18, 1
    %p104 = por %p102, %p103
    %p106 = scmp.ne.s32.totalorder %s91, %s105
    %p107 = scmp.eq.s32.totalorder %s18, 0
    %p108 = por %p106, %p107
    %s110 = sadd.s32 %s109, 1
    %p113 = scmp.eq.s32.totalorder %s12, 1
    %p114 = scmp.ne.s32.totalorder %s109, %s111
    %p115 = scmp.eq.s32.totalorder %s12, 0
    %p116 = por %p114, %p115
    %p117 = scmp.ne.s32.totalorder %s109, %s111
    %p118 = scmp.eq.s32.totalorder %s17, 1
    %p119 = por %p117, %p118
    %p120 = scmp.ne.s32.totalorder %s111, %s112
    %p121 = scmp.eq.s32.totalorder %s17, 0
    %p122 = por %p120, %p121
    %p123 = scmp.ne.s32.totalorder %s111, %s112
    %p124 = scmp.eq.s32.totalorder %s18, 1
    %p125 = por %p123, %p124
    %p127 = scmp.ne.s32.totalorder %s112, %s126
    %p128 = scmp.eq.s32.totalorder %s18, 0
    %p129 = por %p127, %p128
    %s130 = ssub.s32 %s12, %s19
    %p131 = scmp.eq.s32.totalorder %s130, 0
    %s133 = sadd.s32 %s132, 1
    %s134 = scalar_select %p131, %s132, %s133
    %p137 = pneg %p131
    %p138 = scmp.eq.s32.totalorder %s12, 1
    %p139 = por %p137, %p138
    %p140 = scmp.ne.s32.totalorder %s132, %s135
    %p141 = scmp.eq.s32.totalorder %s12, 0
    %p142 = por %p140, %p141
    %p143 = scmp.ne.s32.totalorder %s132, %s135
    %p144 = scmp.eq.s32.totalorder %s17, 1
    %p145 = por %p143, %p144
    %p146 = scmp.ne.s32.totalorder %s135, %s136
    %p147 = scmp.eq.s32.totalorder %s17, 0
    %p148 = por %p146, %p147
    %p149 = scmp.ne.s32.totalorder %s135, %s136
    %p150 = scmp.eq.s32.totalorder %s18, 1
    %p151 = por %p149, %p150
    %p153 = scmp.ne.s32.totalorder %s136, %s152
    %p154 = scmp.eq.s32.totalorder %s18, 0
    %p155 = por %p153, %p154
    %p156 = scmp.le.s32.totalorder 1, %s12
    %p157 = scmp.lt.s32.totalorder %s12, 3
    %p158 = pnand %p156, %p157
    %p159 = pneg %p158
    // Predicated region
    $region9: #{tpu_custom_call.1} parent=5 // pred_check
      _
    $region10: #{tpu_custom_call.1} parent=5 // pred_check_branch
      %161 = sbr.rel (%p158) target = $region12
    $region11: #{tpu_custom_call.1} parent=5 // pred_region
      %s162 = ssub.s32 %s12, 1
      // Predicated region
      $region13: #{tpu_custom_call.1} parent=11 // pred_check
        %p163 = pneg %p59
      $region14: #{tpu_custom_call.1} parent=11 // pred_check_branch
        %165 = sbr.rel (%p163) target = $region16
      $region15: #{tpu_custom_call.1} parent=11 // pred_region
        _
      $region16: #{tpu_custom_call.1} parent=11 // pred_fallthru
        _
      // Predicated region
      $region17: #{tpu_custom_call.1} parent=11 // pred_check
        %p166 = pneg %p80
      $region18: #{tpu_custom_call.1} parent=11 // pred_check_branch
        %168 = sbr.rel (%p166) target = $region20
      $region19: #{tpu_custom_call.1} parent=11 // pred_region
        _
      $region20: #{tpu_custom_call.1} parent=11 // pred_fallthru
        _
      // Predicated region
      $region21: #{tpu_custom_call.1} parent=11 // pred_check
        %p169 = pneg %p101
      $region22: #{tpu_custom_call.1} parent=11 // pred_check_branch
        %171 = sbr.rel (%p169) target = $region24
      $region23: #{tpu_custom_call.1} parent=11 // pred_region
        _
      $region24: #{tpu_custom_call.1} parent=11 // pred_fallthru
        _
      // Predicated region
      $region25: #{tpu_custom_call.1} parent=11 // pred_check
        %p172 = pneg %p122
      $region26: #{tpu_custom_call.1} parent=11 // pred_check_branch
        %174 = sbr.rel (%p172) target = $region28
      $region27: #{tpu_custom_call.1} parent=11 // pred_region
        _
      $region28: #{tpu_custom_call.1} parent=11 // pred_fallthru
        _
    $region12: #{tpu_custom_call.1} parent=5 // pred_fallthru
      _
    %p175 = scmp.lt.s32.totalorder %s12, 2
    // Predicated region
    $region29: #{tpu_custom_call.1} parent=5 // pred_check
      %p176 = pneg %p175
    $region30: #{tpu_custom_call.1} parent=5 // pred_check_branch
      %178 = sbr.rel (%p176) target = $region32
    $region31: #{tpu_custom_call.1} parent=5 // pred_region
      // Predicated region
      $region33: #{tpu_custom_call.1} parent=31 // pred_check
        %p179 = pneg %p32
      $region34: #{tpu_custom_call.1} parent=31 // pred_check_branch
        %181 = sbr.rel (%p179) target = $region36
      $region35: #{tpu_custom_call.1} parent=31 // pred_region
        %s182 = smul.u32 3, %s12
        %p183 = scmp.lt.s32.totalorder %s182, 5
        %s184 = scalar_select %p183, %s182, 5
        %s185 = smul.addr %s184, 8
        %s186 = scalar_lea.vmem %s0, %s185
        %s187 = smul.u32 3, %s12
      $region36: #{tpu_custom_call.1} parent=31 // pred_fallthru
        _
    $region32: #{tpu_custom_call.1} parent=5 // pred_fallthru
      _
    %p188 = scmp.le.s32.totalorder 1, %s12
    %p189 = scmp.lt.s32.totalorder %s12, 3
    %p190 = pnand %p188, %p189
    %p191 = pneg %p190
    // Predicated region
    $region37: #{tpu_custom_call.1} parent=5 // pred_check
      _
    $region38: #{tpu_custom_call.1} parent=5 // pred_check_branch
      %193 = sbr.rel (%p190) target = $region40
    $region39: #{tpu_custom_call.1} parent=5 // pred_region
      %s194 = ssub.s32 %s12, 1
      %s195 = smul.u32 3, %s17
      %p196 = scmp.lt.s32.totalorder %s195, 5
      %s197 = scalar_select %p196, %s195, 5
      %s198 = smul.addr %s197, 8
      %s199 = scalar_lea.vmem %s0, %s198
      %p200 = pneg %p38
      %p201 = pneg %p35
      %p202 = pneg %p59
      %p203 = pneg %p56
      %p204 = pneg %p80
      %p205 = pneg %p77
      %p206 = pneg %p101
      %p207 = pneg %p98
      %p208 = pneg %p122
      %p209 = pneg %p119
      %p210 = pneg %p148
      %p211 = pneg %p145
      %s212 = smul.u32 3, %s17
      %p213 = scmp.lt.s32.totalorder %s212, 5
      %s214 = scalar_select %p213, %s212, 5
      %s215 = smul.addr %s214, 8
      %s216 = scalar_lea.vmem %s5, %s215
      %s217 = smul.u32 3, %s17
      %p218 = scmp.lt.s32.totalorder %s217, 5
      %s219 = scalar_select %p218, %s217, 5
      %s220 = smul.addr %s219, 8
      %s221 = scalar_lea.vmem %s0, %s220
      %s222 = smul.u32 3, %s17
      %s223 = smul.u32 3, %s17
      %p224 = scmp.lt.s32.totalorder %s223, 5
      %s225 = scalar_select %p224, %s223, 5
      %s226 = smul.addr %s225, 8
      %s227 = scalar_lea.vmem %s5, %s226
      %s228 = smul.u32 3, %s17
      %v229 = vld [vmem:[%s221] sm:$0xff]
      %v230 = vld [vmem:[%s221 + $0x8] sm:$0xff]
      %v231 = vld [vmem:[%s221 + $0x10] sm:$0xff]
      %v232 = vld [vmem:[%s1] sm:$0xff]
      %v233 = vld [vmem:[%s2] sm:$0x1]
      %v235 = vlaneseq
      %v236 = vshrl.u32 %v235, 7
      %v237 = vsub.s32 0, %v236
      %v238 = vrot.slane %v233, %v237
      %vm240 = vcmask 64512
      %v242 = vsel %vm240, %v229, 0
      %v245 = vsel %vm240, %v230, 0
      %v248 = vsel %vm240, %v231, 0
      %250 = vmatprep.subr.mxu0 0.0
      %v251 = vand.u32 %v232, 4294901760
      %252 = vmatpush1.msra.mxu0 %v251
      %253 = vmatprep.subr.mxu0 0.0
      %254 = vmatpush1.msra.mxu0 0.0
      %255 = vmatprep.subr.mxu0 0.0
      %256 = vmatpush1.msra.mxu0 0.0
      %257 = vmatprep.subr.mxu0 0.0
      %258 = vmatpush1.msra.mxu0 0.0
      %259 = vmatprep.subr.mxu0 0.0
      %260 = vmatpush1.msra.mxu0 0.0
      %261 = vmatprep.subr.mxu0 0.0
      %262 = vmatpush1.msra.mxu0 0.0
      %263 = vmatprep.subr.mxu0 0.0
      %264 = vmatpush1.msra.mxu0 0.0
      %265 = vmatprep.subr.mxu0 0.0
      %266 = vmatpush1.msra.mxu0 0.0
      %267 = vmatprep.subr.mxu0 0.0
      %268 = vmatpush1.msra.mxu0 0.0
      %269 = vmatprep.subr.mxu0 0.0
      %270 = vmatpush1.msra.mxu0 0.0
      %271 = vmatprep.subr.mxu0 0.0
      %272 = vmatpush1.msra.mxu0 0.0
      %273 = vmatprep.subr.mxu0 0.0
      %274 = vmatpush1.msra.mxu0 0.0
      %275 = vmatprep.subr.mxu0 0.0
      %276 = vmatpush1.msra.mxu0 0.0
      %277 = vmatprep.subr.mxu0 0.0
      %278 = vmatpush1.msra.mxu0 0.0
      %279 = vmatprep.subr.mxu0 0.0
      %280 = vmatpush1.msra.mxu0 0.0
      %281 = vmatprep.subr.mxu0 0.0
      %282 = vmatpush1.msra.mxu0 0.0
      %283 = vmatprep.subr.mxu0 0.0
      %284 = vmatpush1.msra.mxu0 0.0
      %285 = vmatprep.subr.mxu0 0.0
      %286 = vmatpush1.msra.mxu0 0.0
      %287 = vmatprep.subr.mxu0 0.0
      %288 = vmatpush1.msra.mxu0 0.0
      %289 = vmatprep.subr.mxu0 0.0
      %290 = vmatpush1.msra.mxu0 0.0
      %291 = vmatprep.subr.mxu0 0.0
      %292 = vmatpush1.msra.mxu0 0.0
      %293 = vmatprep.subr.mxu0 0.0
      %294 = vmatpush1.msra.mxu0 0.0
      %295 = vmatprep.subr.mxu0 0.0
      %296 = vmatpush1.msra.mxu0 0.0
      %297 = vmatprep.subr.mxu0 0.0
      %298 = vmatpush1.msra.mxu0 0.0
      %299 = vmatprep.subr.mxu0 0.0
      %300 = vmatpush1.msra.mxu0 0.0
      %301 = vmatprep.subr.mxu0 0.0
      %302 = vmatpush1.msra.mxu0 0.0
      %303 = vmatprep.subr.mxu0 0.0
      %304 = vmatpush1.msra.mxu0 0.0
      %305 = vmatprep.subr.mxu0 0.0
      %306 = vmatpush1.msra.mxu0 0.0
      %307 = vmatprep.subr.mxu0 0.0
      %308 = vmatpush1.msra.mxu0 0.0
      %309 = vmatprep.subr.mxu0 0.0
      %310 = vmatpush1.msra.mxu0 0.0
      %311 = vmatprep.subr.mxu0 0.0
      %312 = vmatpush1.msra.mxu0 0.0
      %313 = vmatprep.subr.mxu0 0.0
      %314 = vmatpush1.msra.mxu0 0.0
      %315 = vmatprep.mubr.f32.mxu0 0.0
      %v316 = vand.u32 %v242, 4294901760
      %v317 = vsub.f32 %v242, %v316
      %v318 = vand.u32 %v317, 4294901760
      %v319 = vsub.f32 %v317, %v318
      %v320 = vand.u32 %v319, 4294901760
      %321 = vmatmul.mubr.f32.gmra.mrb[0].mxu0 %v320
      %v322 = vpop.f32.mrb[0].mxu0
      %v323 = vadd.f32 %v238, %v322
      %v324 = vpop.f32.mrb[0].mxu0
      %325 = vmatprep.mubr.f32.mxu0 0.0
      %v326 = vand.u32 %v245, 4294901760
      %v327 = vsub.f32 %v245, %v326
      %v328 = vand.u32 %v327, 4294901760
      %v329 = vsub.f32 %v327, %v328
      %v330 = vand.u32 %v329, 4294901760
      %331 = vmatmul.mubr.f32.gmra.mrb[0].mxu0 %v330
      %v332 = vpop.f32.mrb[0].mxu0
      %v333 = vadd.f32 %v238, %v332
      %v334 = vpop.f32.mrb[0].mxu0
      %335 = vmatprep.mubr.f32.mxu0 0.0
      %v336 = vand.u32 %v248, 4294901760
      %v337 = vsub.f32 %v248, %v336
      %v338 = vand.u32 %v337, 4294901760
      %v339 = vsub.f32 %v337, %v338
      %v340 = vand.u32 %v339, 4294901760
      %341 = vmatmul.mubr.f32.gmra.mrb[0].mxu0 %v340
      %v342 = vpop.f32.mrb[0].mxu0
      %v343 = vadd.f32 %v238, %v342
      %v344 = vpop.f32.mrb[0].mxu0
      %345 = vdwg.mxu0
      %346 = vmatprep.subr.mxu0 0.0
      %v347 = vand.u32 %v232, 4294901760
      %v348 = vsub.f32 %v232, %v347
      %v349 = vand.u32 %v348, 4294901760
      %v350 = vsub.f32 %v348, %v349
      %v351 = vand.u32 %v350, 4294901760
      %352 = vmatpush1.msra.mxu0 %v351
      %353 = vmatprep.subr.mxu0 0.0
      %354 = vmatpush1.msra.mxu0 0.0
      %355 = vmatprep.subr.mxu0 0.0
      %356 = vmatpush1.msra.mxu0 0.0
      %357 = vmatprep.subr.mxu0 0.0
      %358 = vmatpush1.msra.mxu0 0.0
      %359 = vmatprep.subr.mxu0 0.0
      %360 = vmatpush1.msra.mxu0 0.0
      %361 = vmatprep.subr.mxu0 0.0
      %362 = vmatpush1.msra.mxu0 0.0
      %363 = vmatprep.subr.mxu0 0.0
      %364 = vmatpush1.msra.mxu0 0.0
      %365 = vmatprep.subr.mxu0 0.0
      %366 = vmatpush1.msra.mxu0 0.0
      %367 = vmatprep.subr.mxu0 0.0
      %368 = vmatpush1.msra.mxu0 0.0
      %369 = vmatprep.subr.mxu0 0.0
      %370 = vmatpush1.msra.mxu0 0.0
      %371 = vmatprep.subr.mxu0 0.0
      %372 = vmatpush1.msra.mxu0 0.0
      %373 = vmatprep.subr.mxu0 0.0
      %374 = vmatpush1.msra.mxu0 0.0
      %375 = vmatprep.subr.mxu0 0.0
      %376 = vmatpush1.msra.mxu0 0.0
      %377 = vmatprep.subr.mxu0 0.0
      %378 = vmatpush1.msra.mxu0 0.0
      %379 = vmatprep.subr.mxu0 0.0
      %380 = vmatpush1.msra.mxu0 0.0
      %381 = vmatprep.subr.mxu0 0.0
      %382 = vmatpush1.msra.mxu0 0.0
      %383 = vmatprep.subr.mxu0 0.0
      %384 = vmatpush1.msra.mxu0 0.0
      %385 = vmatprep.subr.mxu0 0.0
      %386 = vmatpush1.msra.mxu0 0.0
      %387 = vmatprep.subr.mxu0 0.0
      %388 = vmatpush1.msra.mxu0 0.0
      %389 = vmatprep.subr.mxu0 0.0
      %390 = vmatpush1.msra.mxu0 0.0
      %391 = vmatprep.subr.mxu0 0.0
      %392 = vmatpush1.msra.mxu0 0.0
      %393 = vmatprep.subr.mxu0 0.0
      %394 = vmatpush1.msra.mxu0 0.0
      %395 = vmatprep.subr.mxu0 0.0
      %396 = vmatpush1.msra.mxu0 0.0
      %397 = vmatprep.subr.mxu0 0.0
      %398 = vmatpush1.msra.mxu0 0.0
      %399 = vmatprep.subr.mxu0 0.0
      %400 = vmatpush1.msra.mxu0 0.0
      %401 = vmatprep.subr.mxu0 0.0
      %402 = vmatpush1.msra.mxu0 0.0
      %403 = vmatprep.subr.mxu0 0.0
      %404 = vmatpush1.msra.mxu0 0.0
      %405 = vmatprep.subr.mxu0 0.0
      %406 = vmatpush1.msra.mxu0 0.0
      %407 = vmatprep.subr.mxu0 0.0
      %408 = vmatpush1.msra.mxu0 0.0
      %409 = vmatprep.subr.mxu0 0.0
      %410 = vmatpush1.msra.mxu0 0.0
      %411 = vmatprep.subr.mxu0 0.0
      %412 = vmatpush1.msra.mxu0 0.0
      %413 = vmatprep.subr.mxu0 0.0
      %414 = vmatpush1.msra.mxu0 0.0
      %415 = vmatprep.mubr.f32.mxu0 0.0
      %v416 = vand.u32 %v242, 4294901760
      %417 = vmatmul.mubr.f32.gmra.mrb[0].mxu0 %v416
      %v418 = vpop.f32.mrb[0].mxu0
      %v419 = vadd.f32 %v323, %v418
      %v420 = vpop.f32.mrb[0].mxu0
      %421 = vmatprep.mubr.f32.mxu0 0.0
      %v422 = vand.u32 %v245, 4294901760
      %423 = vmatmul.mubr.f32.gmra.mrb[0].mxu0 %v422
      %v424 = vpop.f32.mrb[0].mxu0
      %v425 = vadd.f32 %v333, %v424
      %v426 = vpop.f32.mrb[0].mxu0
      %427 = vmatprep.mubr.f32.mxu0 0.0
      %v428 = vand.u32 %v248, 4294901760
      %429 = vmatmul.mubr.f32.gmra.mrb[0].mxu0 %v428
      %v430 = vpop.f32.mrb[0].mxu0
      %v431 = vadd.f32 %v343, %v430
      %v432 = vpop.f32.mrb[0].mxu0
      %433 = vdwg.mxu0
      %434 = vmatprep.subr.mxu0 0.0
      %v435 = vand.u32 %v232, 4294901760
      %v436 = vsub.f32 %v232, %v435
      %437 = vmatpush1.msra.mxu0 %v436
      %438 = vmatprep.subr.mxu0 0.0
      %439 = vmatpush1.msra.mxu0 0.0
      %440 = vmatprep.subr.mxu0 0.0
      %441 = vmatpush1.msra.mxu0 0.0
      %442 = vmatprep.subr.mxu0 0.0
      %443 = vmatpush1.msra.mxu0 0.0
      %444 = vmatprep.subr.mxu0 0.0
      %445 = vmatpush1.msra.mxu0 0.0
      %446 = vmatprep.subr.mxu0 0.0
      %447 = vmatpush1.msra.mxu0 0.0
      %448 = vmatprep.subr.mxu0 0.0
      %449 = vmatpush1.msra.mxu0 0.0
      %450 = vmatprep.subr.mxu0 0.0
      %451 = vmatpush1.msra.mxu0 0.0
      %452 = vmatprep.subr.mxu0 0.0
      %453 = vmatpush1.msra.mxu0 0.0
      %454 = vmatprep.subr.mxu0 0.0
      %455 = vmatpush1.msra.mxu0 0.0
      %456 = vmatprep.subr.mxu0 0.0
      %457 = vmatpush1.msra.mxu0 0.0
      %458 = vmatprep.subr.mxu0 0.0
      %459 = vmatpush1.msra.mxu0 0.0
      %460 = vmatprep.subr.mxu0 0.0
      %461 = vmatpush1.msra.mxu0 0.0
      %462 = vmatprep.subr.mxu0 0.0
      %463 = vmatpush1.msra.mxu0 0.0
      %464 = vmatprep.subr.mxu0 0.0
      %465 = vmatpush1.msra.mxu0 0.0
      %466 = vmatprep.subr.mxu0 0.0
      %467 = vmatpush1.msra.mxu0 0.0
      %468 = vmatprep.subr.mxu0 0.0
      %469 = vmatpush1.msra.mxu0 0.0
      %470 = vmatprep.subr.mxu0 0.0
      %471 = vmatpush1.msra.mxu0 0.0
      %472 = vmatprep.subr.mxu0 0.0
      %473 = vmatpush1.msra.mxu0 0.0
      %474 = vmatprep.subr.mxu0 0.0
      %475 = vmatpush1.msra.mxu0 0.0
      %476 = vmatprep.subr.mxu0 0.0
      %477 = vmatpush1.msra.mxu0 0.0
      %478 = vmatprep.subr.mxu0 0.0
      %479 = vmatpush1.msra.mxu0 0.0
      %480 = vmatprep.subr.mxu0 0.0
      %481 = vmatpush1.msra.mxu0 0.0
      %482 = vmatprep.subr.mxu0 0.0
      %483 = vmatpush1.msra.mxu0 0.0
      %484 = vmatprep.subr.mxu0 0.0
      %485 = vmatpush1.msra.mxu0 0.0
      %486 = vmatprep.subr.mxu0 0.0
      %487 = vmatpush1.msra.mxu0 0.0
      %488 = vmatprep.subr.mxu0 0.0
      %489 = vmatpush1.msra.mxu0 0.0
      %490 = vmatprep.subr.mxu0 0.0
      %491 = vmatpush1.msra.mxu0 0.0
      %492 = vmatprep.subr.mxu0 0.0
      %493 = vmatpush1.msra.mxu0 0.0
      %494 = vmatprep.subr.mxu0 0.0
      %495 = vmatpush1.msra.mxu0 0.0
      %496 = vmatprep.subr.mxu0 0.0
      %497 = vmatpush1.msra.mxu0 0.0
      %498 = vmatprep.subr.mxu0 0.0
      %499 = vmatpush1.msra.mxu0 0.0
      %500 = vmatprep.mubr.f32.mxu0 0.0
      %v501 = vand.u32 %v242, 4294901760
      %v502 = vsub.f32 %v242, %v501
      %503 = vmatmul.mubr.f32.gmra.mrb[0].mxu0 %v502
      %v504 = vpop.f32.mrb[0].mxu0
      %v505 = vadd.f32 %v419, %v504
      %v506 = vpop.f32.mrb[0].mxu0
      %507 = vmatprep.mubr.f32.mxu0 0.0
      %v508 = vand.u32 %v245, 4294901760
      %v509 = vsub.f32 %v245, %v508
      %510 = vmatmul.mubr.f32.gmra.mrb[0].mxu0 %v509
      %v511 = vpop.f32.mrb[0].mxu0
      %v512 = vadd.f32 %v425, %v511
      %v513 = vpop.f32.mrb[0].mxu0
      %514 = vmatprep.mubr.f32.mxu0 0.0
      %v515 = vand.u32 %v248, 4294901760
      %v516 = vsub.f32 %v248, %v515
      %517 = vmatmul.mubr.f32.gmra.mrb[0].mxu0 %v516
      %v518 = vpop.f32.mrb[0].mxu0
      %v519 = vadd.f32 %v431, %v518
      %v520 = vpop.f32.mrb[0].mxu0
      %521 = vdwg.mxu0
      %522 = vmatprep.subr.mxu0 0.0
      %v523 = vand.u32 %v232, 4294901760
      %524 = vmatpush1.msra.mxu0 %v523
      %525 = vmatprep.subr.mxu0 0.0
      %526 = vmatpush1.msra.mxu0 0.0
      %527 = vmatprep.subr.mxu0 0.0
      %528 = vmatpush1.msra.mxu0 0.0
      %529 = vmatprep.subr.mxu0 0.0
      %530 = vmatpush1.msra.mxu0 0.0
      %531 = vmatprep.subr.mxu0 0.0
      %532 = vmatpush1.msra.mxu0 0.0
      %533 = vmatprep.subr.mxu0 0.0
      %534 = vmatpush1.msra.mxu0 0.0
      %535 = vmatprep.subr.mxu0 0.0
      %536 = vmatpush1.msra.mxu0 0.0
      %537 = vmatprep.subr.mxu0 0.0
      %538 = vmatpush1.msra.mxu0 0.0
      %539 = vmatprep.subr.mxu0 0.0
      %540 = vmatpush1.msra.mxu0 0.0
      %541 = vmatprep.subr.mxu0 0.0
      %542 = vmatpush1.msra.mxu0 0.0
      %543 = vmatprep.subr.mxu0 0.0
      %544 = vmatpush1.msra.mxu0 0.0
      %545 = vmatprep.subr.mxu0 0.0
      %546 = vmatpush1.msra.mxu0 0.0
      %547 = vmatprep.subr.mxu0 0.0
      %548 = vmatpush1.msra.mxu0 0.0
      %549 = vmatprep.subr.mxu0 0.0
      %550 = vmatpush1.msra.mxu0 0.0
      %551 = vmatprep.subr.mxu0 0.0
      %552 = vmatpush1.msra.mxu0 0.0
      %553 = vmatprep.subr.mxu0 0.0
      %554 = vmatpush1.msra.mxu0 0.0
      %555 = vmatprep.subr.mxu0 0.0
      %556 = vmatpush1.msra.mxu0 0.0
      %557 = vmatprep.subr.mxu0 0.0
      %558 = vmatpush1.msra.mxu0 0.0
      %559 = vmatprep.subr.mxu0 0.0
      %560 = vmatpush1.msra.mxu0 0.0
      %561 = vmatprep.subr.mxu0 0.0
      %562 = vmatpush1.msra.mxu0 0.0
      %563 = vmatprep.subr.mxu0 0.0
      %564 = vmatpush1.msra.mxu0 0.0
      %565 = vmatprep.subr.mxu0 0.0
      %566 = vmatpush1.msra.mxu0 0.0
      %567 = vmatprep.subr.mxu0 0.0
      %568 = vmatpush1.msra.mxu0 0.0
      %569 = vmatprep.subr.mxu0 0.0
      %570 = vmatpush1.msra.mxu0 0.0
      %571 = vmatprep.subr.mxu0 0.0
      %572 = vmatpush1.msra.mxu0 0.0
      %573 = vmatprep.subr.mxu0 0.0
      %574 = vmatpush1.msra.mxu0 0.0
      %575 = vmatprep.subr.mxu0 0.0
      %576 = vmatpush1.msra.mxu0 0.0
      %577 = vmatprep.subr.mxu0 0.0
      %578 = vmatpush1.msra.mxu0 0.0
      %579 = vmatprep.subr.mxu0 0.0
      %580 = vmatpush1.msra.mxu0 0.0
      %581 = vmatprep.subr.mxu0 0.0
      %582 = vmatpush1.msra.mxu0 0.0
      %583 = vmatprep.subr.mxu0 0.0
      %584 = vmatpush1.msra.mxu0 0.0
      %585 = vmatprep.subr.mxu0 0.0
      %586 = vmatpush1.msra.mxu0 0.0
      %587 = vmatprep.mubr.f32.mxu0 0.0
      %v588 = vand.u32 %v242, 4294901760
      %v589 = vsub.f32 %v242, %v588
      %v590 = vand.u32 %v589, 4294901760
      %591 = vmatmul.mubr.f32.gmra.mrb[0].mxu0 %v590
      %v592 = vpop.f32.mrb[0].mxu0
      %v593 = vadd.f32 %v505, %v592
      %v594 = vpop.f32.mrb[0].mxu0
      %595 = vmatprep.mubr.f32.mxu0 0.0
      %v596 = vand.u32 %v245, 4294901760
      %v597 = vsub.f32 %v245, %v596
      %v598 = vand.u32 %v597, 4294901760
      %599 = vmatmul.mubr.f32.gmra.mrb[0].mxu0 %v598
      %v600 = vpop.f32.mrb[0].mxu0
      %v601 = vadd.f32 %v512, %v600
      %v602 = vpop.f32.mrb[0].mxu0
      %603 = vmatprep.mubr.f32.mxu0 0.0
      %v604 = vand.u32 %v248, 4294901760
      %v605 = vsub.f32 %v248, %v604
      %v606 = vand.u32 %v605, 4294901760
      %607 = vmatmul.mubr.f32.gmra.mrb[0].mxu0 %v606
      %v608 = vpop.f32.mrb[0].mxu0
      %v609 = vadd.f32 %v519, %v608
      %v610 = vpop.f32.mrb[0].mxu0
      %611 = vdwg.mxu0
      %612 = vmatprep.subr.mxu0 0.0
      %v613 = vand.u32 %v232, 4294901760
      %v614 = vsub.f32 %v232, %v613
      %v615 = vand.u32 %v614, 4294901760
      %616 = vmatpush1.msra.mxu0 %v615
      %617 = vmatprep.subr.mxu0 0.0
      %618 = vmatpush1.msra.mxu0 0.0
      %619 = vmatprep.subr.mxu0 0.0
      %620 = vmatpush1.msra.mxu0 0.0
      %621 = vmatprep.subr.mxu0 0.0
      %622 = vmatpush1.msra.mxu0 0.0
      %623 = vmatprep.subr.mxu0 0.0
      %624 = vmatpush1.msra.mxu0 0.0
      %625 = vmatprep.subr.mxu0 0.0
      %626 = vmatpush1.msra.mxu0 0.0
      %627 = vmatprep.subr.mxu0 0.0
      %628 = vmatpush1.msra.mxu0 0.0
      %629 = vmatprep.subr.mxu0 0.0
      %630 = vmatpush1.msra.mxu0 0.0
      %631 = vmatprep.subr.mxu0 0.0
      %632 = vmatpush1.msra.mxu0 0.0
      %633 = vmatprep.subr.mxu0 0.0
      %634 = vmatpush1.msra.mxu0 0.0
      %635 = vmatprep.subr.mxu0 0.0
      %636 = vmatpush1.msra.mxu0 0.0
      %637 = vmatprep.subr.mxu0 0.0
      %638 = vmatpush1.msra.mxu0 0.0
      %639 = vmatprep.subr.mxu0 0.0
      %640 = vmatpush1.msra.mxu0 0.0
      %641 = vmatprep.subr.mxu0 0.0
      %642 = vmatpush1.msra.mxu0 0.0
      %643 = vmatprep.subr.mxu0 0.0
      %644 = vmatpush1.msra.mxu0 0.0
      %645 = vmatprep.subr.mxu0 0.0
      %646 = vmatpush1.msra.mxu0 0.0
      %647 = vmatprep.subr.mxu0 0.0
      %648 = vmatpush1.msra.mxu0 0.0
      %649 = vmatprep.subr.mxu0 0.0
      %650 = vmatpush1.msra.mxu0 0.0
      %651 = vmatprep.subr.mxu0 0.0
      %652 = vmatpush1.msra.mxu0 0.0
      %653 = vmatprep.subr.mxu0 0.0
      %654 = vmatpush1.msra.mxu0 0.0
      %655 = vmatprep.subr.mxu0 0.0
      %656 = vmatpush1.msra.mxu0 0.0
      %657 = vmatprep.subr.mxu0 0.0
      %658 = vmatpush1.msra.mxu0 0.0
      %659 = vmatprep.subr.mxu0 0.0
      %660 = vmatpush1.msra.mxu0 0.0
      %661 = vmatprep.subr.mxu0 0.0
      %662 = vmatpush1.msra.mxu0 0.0
      %663 = vmatprep.subr.mxu0 0.0
      %664 = vmatpush1.msra.mxu0 0.0
      %665 = vmatprep.subr.mxu0 0.0
      %666 = vmatpush1.msra.mxu0 0.0
      %667 = vmatprep.subr.mxu0 0.0
      %668 = vmatpush1.msra.mxu0 0.0
      %669 = vmatprep.subr.mxu0 0.0
      %670 = vmatpush1.msra.mxu0 0.0
      %671 = vmatprep.subr.mxu0 0.0
      %672 = vmatpush1.msra.mxu0 0.0
      %673 = vmatprep.subr.mxu0 0.0
      %674 = vmatpush1.msra.mxu0 0.0
      %675 = vmatprep.subr.mxu0 0.0
      %676 = vmatpush1.msra.mxu0 0.0
      %677 = vmatprep.subr.mxu0 0.0
      %678 = vmatpush1.msra.mxu0 0.0
      %679 = vmatprep.mubr.f32.mxu0 0.0
      %v680 = vand.u32 %v242, 4294901760
      %681 = vmatmul.mubr.f32.gmra.mrb[0].mxu0 %v680
      %v682 = vpop.f32.mrb[0].mxu0
      %v683 = vadd.f32 %v593, %v682
      %v684 = vpop.f32.mrb[0].mxu0
      %685 = vmatprep.mubr.f32.mxu0 0.0
      %v686 = vand.u32 %v245, 4294901760
      %687 = vmatmul.mubr.f32.gmra.mrb[0].mxu0 %v686
      %v688 = vpop.f32.mrb[0].mxu0
      %v689 = vadd.f32 %v601, %v688
      %v690 = vpop.f32.mrb[0].mxu0
      %691 = vmatprep.mubr.f32.mxu0 0.0
      %v692 = vand.u32 %v248, 4294901760
      %693 = vmatmul.mubr.f32.gmra.mrb[0].mxu0 %v692
      %v694 = vpop.f32.mrb[0].mxu0
      %v695 = vadd.f32 %v609, %v694
      %v696 = vpop.f32.mrb[0].mxu0
      %697 = vdwg.mxu0
      %698 = vmatprep.subr.mxu0 0.0
      %v699 = vand.u32 %v232, 4294901760
      %700 = vmatpush1.msra.mxu0 %v699
      %701 = vmatprep.subr.mxu0 0.0
      %702 = vmatpush1.msra.mxu0 0.0
      %703 = vmatprep.subr.mxu0 0.0
      %704 = vmatpush1.msra.mxu0 0.0
      %705 = vmatprep.subr.mxu0 0.0
      %706 = vmatpush1.msra.mxu0 0.0
      %707 = vmatprep.subr.mxu0 0.0
      %708 = vmatpush1.msra.mxu0 0.0
      %709 = vmatprep.subr.mxu0 0.0
      %710 = vmatpush1.msra.mxu0 0.0
      %711 = vmatprep.subr.mxu0 0.0
      %712 = vmatpush1.msra.mxu0 0.0
      %713 = vmatprep.subr.mxu0 0.0
      %714 = vmatpush1.msra.mxu0 0.0
      %715 = vmatprep.subr.mxu0 0.0
      %716 = vmatpush1.msra.mxu0 0.0
      %717 = vmatprep.subr.mxu0 0.0
      %718 = vmatpush1.msra.mxu0 0.0
      %719 = vmatprep.subr.mxu0 0.0
      %720 = vmatpush1.msra.mxu0 0.0
      %721 = vmatprep.subr.mxu0 0.0
      %722 = vmatpush1.msra.mxu0 0.0
      %723 = vmatprep.subr.mxu0 0.0
      %724 = vmatpush1.msra.mxu0 0.0
      %725 = vmatprep.subr.mxu0 0.0
      %726 = vmatpush1.msra.mxu0 0.0
      %727 = vmatprep.subr.mxu0 0.0
      %728 = vmatpush1.msra.mxu0 0.0
      %729 = vmatprep.subr.mxu0 0.0
      %730 = vmatpush1.msra.mxu0 0.0
      %731 = vmatprep.subr.mxu0 0.0
      %732 = vmatpush1.msra.mxu0 0.0
      %733 = vmatprep.subr.mxu0 0.0
      %734 = vmatpush1.msra.mxu0 0.0
      %735 = vmatprep.subr.mxu0 0.0
      %736 = vmatpush1.msra.mxu0 0.0
      %737 = vmatprep.subr.mxu0 0.0
      %738 = vmatpush1.msra.mxu0 0.0
      %739 = vmatprep.subr.mxu0 0.0
      %740 = vmatpush1.msra.mxu0 0.0
      %741 = vmatprep.subr.mxu0 0.0
      %742 = vmatpush1.msra.mxu0 0.0
      %743 = vmatprep.subr.mxu0 0.0
      %744 = vmatpush1.msra.mxu0 0.0
      %745 = vmatprep.subr.mxu0 0.0
      %746 = vmatpush1.msra.mxu0 0.0
      %747 = vmatprep.subr.mxu0 0.0
      %748 = vmatpush1.msra.mxu0 0.0
      %749 = vmatprep.subr.mxu0 0.0
      %750 = vmatpush1.msra.mxu0 0.0
      %751 = vmatprep.subr.mxu0 0.0
      %752 = vmatpush1.msra.mxu0 0.0
      %753 = vmatprep.subr.mxu0 0.0
      %754 = vmatpush1.msra.mxu0 0.0
      %755 = vmatprep.subr.mxu0 0.0
      %756 = vmatpush1.msra.mxu0 0.0
      %757 = vmatprep.subr.mxu0 0.0
      %758 = vmatpush1.msra.mxu0 0.0
      %759 = vmatprep.subr.mxu0 0.0
      %760 = vmatpush1.msra.mxu0 0.0
      %761 = vmatprep.subr.mxu0 0.0
      %762 = vmatpush1.msra.mxu0 0.0
      %763 = vmatprep.mubr.f32.mxu0 0.0
      %v764 = vand.u32 %v242, 4294901760
      %765 = vmatmul.mubr.f32.gmra.mrb[0].mxu0 %v764
      %v766 = vpop.f32.mrb[0].mxu0
      %v767 = vadd.f32 %v683, %v766
      %v768 = vpop.f32.mrb[0].mxu0
      %769 = vmatprep.mubr.f32.mxu0 0.0
      %v770 = vand.u32 %v245, 4294901760
      %771 = vmatmul.mubr.f32.gmra.mrb[0].mxu0 %v770
      %v772 = vpop.f32.mrb[0].mxu0
      %v773 = vadd.f32 %v689, %v772
      %v774 = vpop.f32.mrb[0].mxu0
      %775 = vmatprep.mubr.f32.mxu0 0.0
      %v776 = vand.u32 %v248, 4294901760
      %777 = vmatmul.mubr.f32.gmra.mrb[0].mxu0 %v776
      %v778 = vpop.f32.mrb[0].mxu0
      %v779 = vadd.f32 %v695, %v778
      %v780 = vpop.f32.mrb[0].mxu0
      %781 = vdwg.mxu0
      %v782 = vmax.f32 %v767, 0.0
      %v783 = vmax.f32 %v773, 0.0
      %v784 = vmax.f32 %v779, 0.0
      %v785 = vld [vmem:[%s3] sm:$0xff]
      %v786 = vld [vmem:[%s3 + $0x8] sm:$0xff]
      %v787 = vld [vmem:[%s3 + $0x10] sm:$0xff]
      %v788 = vld [vmem:[%s3 + $0x18] sm:$0xff]
      %v789 = vld [vmem:[%s3 + $0x20] sm:$0xff]
      %v790 = vld [vmem:[%s3 + $0x28] sm:$0xff]
      %v791 = vld [vmem:[%s3 + $0x30] sm:$0xff]
      %v792 = vld [vmem:[%s3 + $0x38] sm:$0xff]
      %v793 = vld [vmem:[%s3 + $0x40] sm:$0xff]
      %v794 = vld [vmem:[%s3 + $0x48] sm:$0xff]
      %v795 = vld [vmem:[%s3 + $0x50] sm:$0xff]
      %v796 = vld [vmem:[%s3 + $0x58] sm:$0xff]
      %v797 = vld [vmem:[%s3 + $0x60] sm:$0xff]
      %v798 = vld [vmem:[%s3 + $0x68] sm:$0xff]
      %v799 = vld [vmem:[%s3 + $0x70] sm:$0xff]
      %v800 = vld [vmem:[%s3 + $0x78] sm:$0xff]
      %s801 = sld [smem:[#allocation2]]
      %v802 = vstv %s801
      %803 = vmatprep.subr.mxu0 0.0
      %v804 = vand.u32 %v785, 4294901760
      %805 = vmatpush1.msra.mxu0 %v804
      %806 = vmatprep.subr.mxu0 0.0
      %v807 = vand.u32 %v786, 4294901760
      %808 = vmatpush1.msra.mxu0 %v807
      %809 = vmatprep.subr.mxu0 0.0
      %v810 = vand.u32 %v787, 4294901760
      %811 = vmatpush1.msra.mxu0 %v810
      %812 = vmatprep.subr.mxu0 0.0
      %v813 = vand.u32 %v788, 4294901760
      %814 = vmatpush1.msra.mxu0 %v813
      %815 = vmatprep.subr.mxu0 0.0
      %v816 = vand.u32 %v789, 4294901760
      %817 = vmatpush1.msra.mxu0 %v816
      %818 = vmatprep.subr.mxu0 0.0
      %v819 = vand.u32 %v790, 4294901760
      %820 = vmatpush1.msra.mxu0 %v819
      %821 = vmatprep.subr.mxu0 0.0
      %v822 = vand.u32 %v791, 4294901760
      %823 = vmatpush1.msra.mxu0 %v822
      %824 = vmatprep.subr.mxu0 0.0
      %v825 = vand.u32 %v792, 4294901760
      %826 = vmatpush1.msra.mxu0 %v825
      %827 = vmatprep.subr.mxu0 0.0
      %v828 = vand.u32 %v793, 4294901760
      %829 = vmatpush1.msra.mxu0 %v828
      %830 = vmatprep.subr.mxu0 0.0
      %v831 = vand.u32 %v794, 4294901760
      %832 = vmatpush1.msra.mxu0 %v831
      %833 = vmatprep.subr.mxu0 0.0
      %v834 = vand.u32 %v795, 4294901760
      %835 = vmatpush1.msra.mxu0 %v834
      %836 = vmatprep.subr.mxu0 0.0
      %v837 = vand.u32 %v796, 4294901760
      %838 = vmatpush1.msra.mxu0 %v837
      %839 = vmatprep.subr.mxu0 0.0
      %v840 = vand.u32 %v797, 4294901760
      %841 = vmatpush1.msra.mxu0 %v840
      %842 = vmatprep.subr.mxu0 0.0
      %v843 = vand.u32 %v798, 4294901760
      %844 = vmatpush1.msra.mxu0 %v843
      %845 = vmatprep.subr.mxu0 0.0
      %v846 = vand.u32 %v799, 4294901760
      %847 = vmatpush1.msra.mxu0 %v846
      %848 = vmatprep.subr.mxu0 0.0
      %v849 = vand.u32 %v800, 4294901760
      %850 = vmatpush1.msra.mxu0 %v849
      %851 = vmatprep.subr.mxu0 0.0
      %852 = vmatpush1.msra.mxu0 0.0
      %853 = vmatprep.subr.mxu0 0.0
      %854 = vmatpush1.msra.mxu0 0.0
      %855 = vmatprep.subr.mxu0 0.0
      %856 = vmatpush1.msra.mxu0 0.0
      %857 = vmatprep.subr.mxu0 0.0
      %858 = vmatpush1.msra.mxu0 0.0
      %859 = vmatprep.subr.mxu0 0.0
      %860 = vmatpush1.msra.mxu0 0.0
      %861 = vmatprep.subr.mxu0 0.0
      %862 = vmatpush1.msra.mxu0 0.0
      %863 = vmatprep.subr.mxu0 0.0
      %864 = vmatpush1.msra.mxu0 0.0
      %865 = vmatprep.subr.mxu0 0.0
      %866 = vmatpush1.msra.mxu0 0.0
      %867 = vmatprep.subr.mxu0 0.0
      %868 = vmatpush1.msra.mxu0 0.0
      %869 = vmatprep.subr.mxu0 0.0
      %870 = vmatpush1.msra.mxu0 0.0
      %871 = vmatprep.subr.mxu0 0.0
      %872 = vmatpush1.msra.mxu0 0.0
      %873 = vmatprep.subr.mxu0 0.0
      %874 = vmatpush1.msra.mxu0 0.0
      %875 = vmatprep.subr.mxu0 0.0
      %876 = vmatpush1.msra.mxu0 0.0
      %877 = vmatprep.subr.mxu0 0.0
      %878 = vmatpush1.msra.mxu0 0.0
      %879 = vmatprep.subr.mxu0 0.0
      %880 = vmatpush1.msra.mxu0 0.0
      %881 = vmatprep.subr.mxu0 0.0
      %882 = vmatpush1.msra.mxu0 0.0
      %883 = vmatprep.mubr.f32.mxu0 0.0
      %v884 = vand.u32 %v782, 4294901760
      %v885 = vsub.f32 %v782, %v884
      %v886 = vand.u32 %v885, 4294901760
      %v887 = vsub.f32 %v885, %v886
      %v888 = vand.u32 %v887, 4294901760
      %889 = vmatmul.mubr.f32.gmra.mrb[0].mxu0 %v888
      %v890 = vpop.f32.mrb[0].mxu0
      %v891 = vadd.f32 %v802, %v890
      %v892 = vpop.f32.mrb[0].mxu0
      %893 = vmatprep.mubr.f32.mxu0 0.0
      %v894 = vand.u32 %v783, 4294901760
      %v895 = vsub.f32 %v783, %v894
      %v896 = vand.u32 %v895, 4294901760
      %v897 = vsub.f32 %v895, %v896
      %v898 = vand.u32 %v897, 4294901760
      %899 = vmatmul.mubr.f32.gmra.mrb[0].mxu0 %v898
      %v900 = vpop.f32.mrb[0].mxu0
      %v901 = vadd.f32 %v802, %v900
      %v902 = vpop.f32.mrb[0].mxu0
      %903 = vmatprep.mubr.f32.mxu0 0.0
      %v904 = vand.u32 %v784, 4294901760
      %v905 = vsub.f32 %v784, %v904
      %v906 = vand.u32 %v905, 4294901760
      %v907 = vsub.f32 %v905, %v906
      %v908 = vand.u32 %v907, 4294901760
      %909 = vmatmul.mubr.f32.gmra.mrb[0].mxu0 %v908
      %v910 = vpop.f32.mrb[0].mxu0
      %v911 = vadd.f32 %v802, %v910
      %v912 = vpop.f32.mrb[0].mxu0
      %913 = vdwg.mxu0
      %914 = vmatprep.subr.mxu0 0.0
      %v915 = vand.u32 %v785, 4294901760
      %v916 = vsub.f32 %v785, %v915
      %v917 = vand.u32 %v916, 4294901760
      %v918 = vsub.f32 %v916, %v917
      %v919 = vand.u32 %v918, 4294901760
      %920 = vmatpush1.msra.mxu0 %v919
      %921 = vmatprep.subr.mxu0 0.0
      %v922 = vand.u32 %v786, 4294901760
      %v923 = vsub.f32 %v786, %v922
      %v924 = vand.u32 %v923, 4294901760
      %v925 = vsub.f32 %v923, %v924
      %v926 = vand.u32 %v925, 4294901760
      %927 = vmatpush1.msra.mxu0 %v926
      %928 = vmatprep.subr.mxu0 0.0
      %v929 = vand.u32 %v787, 4294901760
      %v930 = vsub.f32 %v787, %v929
      %v931 = vand.u32 %v930, 4294901760
      %v932 = vsub.f32 %v930, %v931
      %v933 = vand.u32 %v932, 4294901760
      %934 = vmatpush1.msra.mxu0 %v933
      %935 = vmatprep.subr.mxu0 0.0
      %v936 = vand.u32 %v788, 4294901760
      %v937 = vsub.f32 %v788, %v936
      %v938 = vand.u32 %v937, 4294901760
      %v939 = vsub.f32 %v937, %v938
      %v940 = vand.u32 %v939, 4294901760
      %941 = vmatpush1.msra.mxu0 %v940
      %942 = vmatprep.subr.mxu0 0.0
      %v943 = vand.u32 %v789, 4294901760
      %v944 = vsub.f32 %v789, %v943
      %v945 = vand.u32 %v944, 4294901760
      %v946 = vsub.f32 %v944, %v945
      %v947 = vand.u32 %v946, 4294901760
      %948 = vmatpush1.msra.mxu0 %v947
      %949 = vmatprep.subr.mxu0 0.0
      %v950 = vand.u32 %v790, 4294901760
      %v951 = vsub.f32 %v790, %v950
      %v952 = vand.u32 %v951, 4294901760
      %v953 = vsub.f32 %v951, %v952
      %v954 = vand.u32 %v953, 4294901760
      %955 = vmatpush1.msra.mxu0 %v954
      %956 = vmatprep.subr.mxu0 0.0
      %v957 = vand.u32 %v791, 4294901760
      %v958 = vsub.f32 %v791, %v957
      %v959 = vand.u32 %v958, 4294901760
      %v960 = vsub.f32 %v958, %v959
      %v961 = vand.u32 %v960, 4294901760
      %962 = vmatpush1.msra.mxu0 %v961
      %963 = vmatprep.subr.mxu0 0.0
      %v964 = vand.u32 %v792, 4294901760
      %v965 = vsub.f32 %v792, %v964
      %v966 = vand.u32 %v965, 4294901760
      %v967 = vsub.f32 %v965, %v966
      %v968 = vand.u32 %v967, 4294901760
      %969 = vmatpush1.msra.mxu0 %v968
      %970 = vmatprep.subr.mxu0 0.0
      %v971 = vand.u32 %v793, 4294901760
      %v972 = vsub.f32 %v793, %v971
      %v973 = vand.u32 %v972, 4294901760
      %v974 = vsub.f32 %v972, %v973
      %v975 = vand.u32 %v974, 4294901760
      %976 = vmatpush1.msra.mxu0 %v975
      %977 = vmatprep.subr.mxu0 0.0
      %v978 = vand.u32 %v794, 4294901760
      %v979 = vsub.f32 %v794, %v978
      %v980 = vand.u32 %v979, 4294901760
      %v981 = vsub.f32 %v979, %v980
      %v982 = vand.u32 %v981, 4294901760
      %983 = vmatpush1.msra.mxu0 %v982
      %984 = vmatprep.subr.mxu0 0.0
      %v985 = vand.u32 %v795, 4294901760
      %v986 = vsub.f32 %v795, %v985
      %v987 = vand.u32 %v986, 4294901760
      %v988 = vsub.f32 %v986, %v987
      %v989 = vand.u32 %v988, 4294901760
      %990 = vmatpush1.msra.mxu0 %v989
      %991 = vmatprep.subr.mxu0 0.0
      %v992 = vand.u32 %v796, 4294901760
      %v993 = vsub.f32 %v796, %v992
      %v994 = vand.u32 %v993, 4294901760
      %v995 = vsub.f32 %v993, %v994
      %v996 = vand.u32 %v995, 4294901760
      %997 = vmatpush1.msra.mxu0 %v996
      %998 = vmatprep.subr.mxu0 0.0
      %v999 = vand.u32 %v797, 4294901760
      %v1000 = vsub.f32 %v797, %v999
      %v1001 = vand.u32 %v1000, 4294901760
      %v1002 = vsub.f32 %v1000, %v1001
      %v1003 = vand.u32 %v1002, 4294901760
      %1004 = vmatpush1.msra.mxu0 %v1003
      %1005 = vmatprep.subr.mxu0 0.0
      %v1006 = vand.u32 %v798, 4294901760
      %v1007 = vsub.f32 %v798, %v1006
      %v1008 = vand.u32 %v1007, 4294901760
      %v1009 = vsub.f32 %v1007, %v1008
      %v1010 = vand.u32 %v1009, 4294901760
      %1011 = vmatpush1.msra.mxu0 %v1010
      %1012 = vmatprep.subr.mxu0 0.0
      %v1013 = vand.u32 %v799, 4294901760
      %v1014 = vsub.f32 %v799, %v1013
      %v1015 = vand.u32 %v1014, 4294901760
      %v1016 = vsub.f32 %v1014, %v1015
      %v1017 = vand.u32 %v1016, 4294901760
      %1018 = vmatpush1.msra.mxu0 %v1017
      %1019 = vmatprep.subr.mxu0 0.0
      %v1020 = vand.u32 %v800, 4294901760
      %v1021 = vsub.f32 %v800, %v1020
      %v1022 = vand.u32 %v1021, 4294901760
      %v1023 = vsub.f32 %v1021, %v1022
      %v1024 = vand.u32 %v1023, 4294901760
      %1025 = vmatpush1.msra.mxu0 %v1024
      %1026 = vmatprep.subr.mxu0 0.0
      %1027 = vmatpush1.msra.mxu0 0.0
      %1028 = vmatprep.subr.mxu0 0.0
      %1029 = vmatpush1.msra.mxu0 0.0
      %1030 = vmatprep.subr.mxu0 0.0
      %1031 = vmatpush1.msra.mxu0 0.0
      %1032 = vmatprep.subr.mxu0 0.0
      %1033 = vmatpush1.msra.mxu0 0.0
      %1034 = vmatprep.subr.mxu0 0.0
      %1035 = vmatpush1.msra.mxu0 0.0
      %1036 = vmatprep.subr.mxu0 0.0
      %1037 = vmatpush1.msra.mxu0 0.0
      %1038 = vmatprep.subr.mxu0 0.0
      %1039 = vmatpush1.msra.mxu0 0.0
      %1040 = vmatprep.subr.mxu0 0.0
      %1041 = vmatpush1.msra.mxu0 0.0
      %1042 = vmatprep.subr.mxu0 0.0
      %1043 = vmatpush1.msra.mxu0 0.0
      %1044 = vmatprep.subr.mxu0 0.0
      %1045 = vmatpush1.msra.mxu0 0.0
      %1046 = vmatprep.subr.mxu0 0.0
      %1047 = vmatpush1.msra.mxu0 0.0
      %1048 = vmatprep.subr.mxu0 0.0
      %1049 = vmatpush1.msra.mxu0 0.0
      %1050 = vmatprep.subr.mxu0 0.0
      %1051 = vmatpush1.msra.mxu0 0.0
      %1052 = vmatprep.subr.mxu0 0.0
      %1053 = vmatpush1.msra.mxu0 0.0
      %1054 = vmatprep.subr.mxu0 0.0
      %1055 = vmatpush1.msra.mxu0 0.0
      %1056 = vmatprep.subr.mxu0 0.0
      %1057 = vmatpush1.msra.mxu0 0.0
      %1058 = vmatprep.mubr.f32.mxu0 0.0
      %v1059 = vand.u32 %v782, 4294901760
      %1060 = vmatmul.mubr.f32.gmra.mrb[0].mxu0 %v1059
      %v1061 = vpop.f32.mrb[0].mxu0
      %v1062 = vadd.f32 %v891, %v1061
      %v1063 = vpop.f32.mrb[0].mxu0
      %1064 = vmatprep.mubr.f32.mxu0 0.0
      %v1065 = vand.u32 %v783, 4294901760
      %1066 = vmatmul.mubr.f32.gmra.mrb[0].mxu0 %v1065
      %v1067 = vpop.f32.mrb[0].mxu0
      %v1068 = vadd.f32 %v901, %v1067
      %v1069 = vpop.f32.mrb[0].mxu0
      %1070 = vmatprep.mubr.f32.mxu0 0.0
      %v1071 = vand.u32 %v784, 4294901760
      %1072 = vmatmul.mubr.f32.gmra.mrb[0].mxu0 %v1071
      %v1073 = vpop.f32.mrb[0].mxu0
      %v1074 = vadd.f32 %v911, %v1073
      %v1075 = vpop.f32.mrb[0].mxu0
      %1076 = vdwg.mxu0
      %1077 = vmatprep.subr.mxu0 0.0
      %v1078 = vand.u32 %v785, 4294901760
      %v1079 = vsub.f32 %v785, %v1078
      %1080 = vmatpush1.msra.mxu0 %v1079
      %1081 = vmatprep.subr.mxu0 0.0
      %v1082 = vand.u32 %v786, 4294901760
      %v1083 = vsub.f32 %v786, %v1082
      %1084 = vmatpush1.msra.mxu0 %v1083
      %1085 = vmatprep.subr.mxu0 0.0
      %v1086 = vand.u32 %v787, 4294901760
      %v1087 = vsub.f32 %v787, %v1086
      %1088 = vmatpush1.msra.mxu0 %v1087
      %1089 = vmatprep.subr.mxu0 0.0
      %v1090 = vand.u32 %v788, 4294901760
      %v1091 = vsub.f32 %v788, %v1090
      %1092 = vmatpush1.msra.mxu0 %v1091
      %1093 = vmatprep.subr.mxu0 0.0
      %v1094 = vand.u32 %v789, 4294901760
      %v1095 = vsub.f32 %v789, %v1094
      %1096 = vmatpush1.msra.mxu0 %v1095
      %1097 = vmatprep.subr.mxu0 0.0
      %v1098 = vand.u32 %v790, 4294901760
      %v1099 = vsub.f32 %v790, %v1098
      %1100 = vmatpush1.msra.mxu0 %v1099
      %1101 = vmatprep.subr.mxu0 0.0
      %v1102 = vand.u32 %v791, 4294901760
      %v1103 = vsub.f32 %v791, %v1102
      %1104 = vmatpush1.msra.mxu0 %v1103
      %1105 = vmatprep.subr.mxu0 0.0
      %v1106 = vand.u32 %v792, 4294901760
      %v1107 = vsub.f32 %v792, %v1106
      %1108 = vmatpush1.msra.mxu0 %v1107
      %1109 = vmatprep.subr.mxu0 0.0
      %v1110 = vand.u32 %v793, 4294901760
      %v1111 = vsub.f32 %v793, %v1110
      %1112 = vmatpush1.msra.mxu0 %v1111
      %1113 = vmatprep.subr.mxu0 0.0
      %v1114 = vand.u32 %v794, 4294901760
      %v1115 = vsub.f32 %v794, %v1114
      %1116 = vmatpush1.msra.mxu0 %v1115
      %1117 = vmatprep.subr.mxu0 0.0
      %v1118 = vand.u32 %v795, 4294901760
      %v1119 = vsub.f32 %v795, %v1118
      %1120 = vmatpush1.msra.mxu0 %v1119
      %1121 = vmatprep.subr.mxu0 0.0
      %v1122 = vand.u32 %v796, 4294901760
      %v1123 = vsub.f32 %v796, %v1122
      %1124 = vmatpush1.msra.mxu0 %v1123
      %1125 = vmatprep.subr.mxu0 0.0
      %v1126 = vand.u32 %v797, 4294901760
      %v1127 = vsub.f32 %v797, %v1126
      %1128 = vmatpush1.msra.mxu0 %v1127
      %1129 = vmatprep.subr.mxu0 0.0
      %v1130 = vand.u32 %v798, 4294901760
      %v1131 = vsub.f32 %v798, %v1130
      %1132 = vmatpush1.msra.mxu0 %v1131
      %1133 = vmatprep.subr.mxu0 0.0
      %v1134 = vand.u32 %v799, 4294901760
      %v1135 = vsub.f32 %v799, %v1134
      %1136 = vmatpush1.msra.mxu0 %v1135
      %1137 = vmatprep.subr.mxu0 0.0
      %v1138 = vand.u32 %v800, 4294901760
      %v1139 = vsub.f32 %v800, %v1138
      %1140 = vmatpush1.msra.mxu0 %v1139
      %1141 = vmatprep.subr.mxu0 0.0
      %1142 = vmatpush1.msra.mxu0 0.0
      %1143 = vmatprep.subr.mxu0 0.0
      %1144 = vmatpush1.msra.mxu0 0.0
      %1145 = vmatprep.subr.mxu0 0.0
      %1146 = vmatpush1.msra.mxu0 0.0
      %1147 = vmatprep.subr.mxu0 0.0
      %1148 = vmatpush1.msra.mxu0 0.0
      %1149 = vmatprep.subr.mxu0 0.0
      %1150 = vmatpush1.msra.mxu0 0.0
      %1151 = vmatprep.subr.mxu0 0.0
      %1152 = vmatpush1.msra.mxu0 0.0
      %1153 = vmatprep.subr.mxu0 0.0
      %1154 = vmatpush1.msra.mxu0 0.0
      %1155 = vmatprep.subr.mxu0 0.0
      %1156 = vmatpush1.msra.mxu0 0.0
      %1157 = vmatprep.subr.mxu0 0.0
      %1158 = vmatpush1.msra.mxu0 0.0
      %1159 = vmatprep.subr.mxu0 0.0
      %1160 = vmatpush1.msra.mxu0 0.0
      %1161 = vmatprep.subr.mxu0 0.0
      %1162 = vmatpush1.msra.mxu0 0.0
      %1163 = vmatprep.subr.mxu0 0.0
      %1164 = vmatpush1.msra.mxu0 0.0
      %1165 = vmatprep.subr.mxu0 0.0
      %1166 = vmatpush1.msra.mxu0 0.0
      %1167 = vmatprep.subr.mxu0 0.0
      %1168 = vmatpush1.msra.mxu0 0.0
      %1169 = vmatprep.subr.mxu0 0.0
      %1170 = vmatpush1.msra.mxu0 0.0
      %1171 = vmatprep.subr.mxu0 0.0
      %1172 = vmatpush1.msra.mxu0 0.0
      %1173 = vmatprep.mubr.f32.mxu0 0.0
      %v1174 = vand.u32 %v782, 4294901760
      %v1175 = vsub.f32 %v782, %v1174
      %1176 = vmatmul.mubr.f32.gmra.mrb[0].mxu0 %v1175
      %v1177 = vpop.f32.mrb[0].mxu0
      %v1178 = vadd.f32 %v1062, %v1177
      %v1179 = vpop.f32.mrb[0].mxu0
      %1180 = vmatprep.mubr.f32.mxu0 0.0
      %v1181 = vand.u32 %v783, 4294901760
      %v1182 = vsub.f32 %v783, %v1181
      %1183 = vmatmul.mubr.f32.gmra.mrb[0].mxu0 %v1182
      %v1184 = vpop.f32.mrb[0].mxu0
      %v1185 = vadd.f32 %v1068, %v1184
      %v1186 = vpop.f32.mrb[0].mxu0
      %1187 = vmatprep.mubr.f32.mxu0 0.0
      %v1188 = vand.u32 %v784, 4294901760
      %v1189 = vsub.f32 %v784, %v1188
      %1190 = vmatmul.mubr.f32.gmra.mrb[0].mxu0 %v1189
      %v1191 = vpop.f32.mrb[0].mxu0
      %v1192 = vadd.f32 %v1074, %v1191
      %v1193 = vpop.f32.mrb[0].mxu0
      %1194 = vdwg.mxu0
      %1195 = vmatprep.subr.mxu0 0.0
      %v1196 = vand.u32 %v785, 4294901760
      %1197 = vmatpush1.msra.mxu0 %v1196
      %1198 = vmatprep.subr.mxu0 0.0
      %v1199 = vand.u32 %v786, 4294901760
      %1200 = vmatpush1.msra.mxu0 %v1199
      %1201 = vmatprep.subr.mxu0 0.0
      %v1202 = vand.u32 %v787, 4294901760
      %1203 = vmatpush1.msra.mxu0 %v1202
      %1204 = vmatprep.subr.mxu0 0.0
      %v1205 = vand.u32 %v788, 4294901760
      %1206 = vmatpush1.msra.mxu0 %v1205
      %1207 = vmatprep.subr.mxu0 0.0
      %v1208 = vand.u32 %v789, 4294901760
      %1209 = vmatpush1.msra.mxu0 %v1208
      %1210 = vmatprep.subr.mxu0 0.0
      %v1211 = vand.u32 %v790, 4294901760
      %1212 = vmatpush1.msra.mxu0 %v1211
      %1213 = vmatprep.subr.mxu0 0.0
      %v1214 = vand.u32 %v791, 4294901760
      %1215 = vmatpush1.msra.mxu0 %v1214
      %1216 = vmatprep.subr.mxu0 0.0
      %v1217 = vand.u32 %v792, 4294901760
      %1218 = vmatpush1.msra.mxu0 %v1217
      %1219 = vmatprep.subr.mxu0 0.0
      %v1220 = vand.u32 %v793, 4294901760
      %1221 = vmatpush1.msra.mxu0 %v1220
      %1222 = vmatprep.subr.mxu0 0.0
      %v1223 = vand.u32 %v794, 4294901760
      %1224 = vmatpush1.msra.mxu0 %v1223
      %1225 = vmatprep.subr.mxu0 0.0
      %v1226 = vand.u32 %v795, 4294901760
      %1227 = vmatpush1.msra.mxu0 %v1226
      %1228 = vmatprep.subr.mxu0 0.0
      %v1229 = vand.u32 %v796, 4294901760
      %1230 = vmatpush1.msra.mxu0 %v1229
      %1231 = vmatprep.subr.mxu0 0.0
      %v1232 = vand.u32 %v797, 4294901760
      %1233 = vmatpush1.msra.mxu0 %v1232
      %1234 = vmatprep.subr.mxu0 0.0
      %v1235 = vand.u32 %v798, 4294901760
      %1236 = vmatpush1.msra.mxu0 %v1235
      %1237 = vmatprep.subr.mxu0 0.0
      %v1238 = vand.u32 %v799, 4294901760
      %1239 = vmatpush1.msra.mxu0 %v1238
      %1240 = vmatprep.subr.mxu0 0.0
      %v1241 = vand.u32 %v800, 4294901760
      %1242 = vmatpush1.msra.mxu0 %v1241
      %1243 = vmatprep.subr.mxu0 0.0
      %1244 = vmatpush1.msra.mxu0 0.0
      %1245 = vmatprep.subr.mxu0 0.0
      %1246 = vmatpush1.msra.mxu0 0.0
      %1247 = vmatprep.subr.mxu0 0.0
      %1248 = vmatpush1.msra.mxu0 0.0
      %1249 = vmatprep.subr.mxu0 0.0
      %1250 = vmatpush1.msra.mxu0 0.0
      %1251 = vmatprep.subr.mxu0 0.0
      %1252 = vmatpush1.msra.mxu0 0.0
      %1253 = vmatprep.subr.mxu0 0.0
      %1254 = vmatpush1.msra.mxu0 0.0
      %1255 = vmatprep.subr.mxu0 0.0
      %1256 = vmatpush1.msra.mxu0 0.0
      %1257 = vmatprep.subr.mxu0 0.0
      %1258 = vmatpush1.msra.mxu0 0.0
      %1259 = vmatprep.subr.mxu0 0.0
      %1260 = vmatpush1.msra.mxu0 0.0
      %1261 = vmatprep.subr.mxu0 0.0
      %1262 = vmatpush1.msra.mxu0 0.0
      %1263 = vmatprep.subr.mxu0 0.0
      %1264 = vmatpush1.msra.mxu0 0.0
      %1265 = vmatprep.subr.mxu0 0.0
      %1266 = vmatpush1.msra.mxu0 0.0
      %1267 = vmatprep.subr.mxu0 0.0
      %1268 = vmatpush1.msra.mxu0 0.0
      %1269 = vmatprep.subr.mxu0 0.0
      %1270 = vmatpush1.msra.mxu0 0.0
      %1271 = vmatprep.subr.mxu0 0.0
      %1272 = vmatpush1.msra.mxu0 0.0
      %1273 = vmatprep.subr.mxu0 0.0
      %1274 = vmatpush1.msra.mxu0 0.0
      %1275 = vmatprep.mubr.f32.mxu0 0.0
      %v1276 = vand.u32 %v782, 4294901760
      %v1277 = vsub.f32 %v782, %v1276
      %v1278 = vand.u32 %v1277, 4294901760
      %1279 = vmatmul.mubr.f32.gmra.mrb[0].mxu0 %v1278
      %v1280 = vpop.f32.mrb[0].mxu0
      %v1281 = vadd.f32 %v1178, %v1280
      %v1282 = vpop.f32.mrb[0].mxu0
      %1283 = vmatprep.mubr.f32.mxu0 0.0
      %v1284 = vand.u32 %v783, 4294901760
      %v1285 = vsub.f32 %v783, %v1284
      %v1286 = vand.u32 %v1285, 4294901760
      %1287 = vmatmul.mubr.f32.gmra.mrb[0].mxu0 %v1286
      %v1288 = vpop.f32.mrb[0].mxu0
      %v1289 = vadd.f32 %v1185, %v1288
      %v1290 = vpop.f32.mrb[0].mxu0
      %1291 = vmatprep.mubr.f32.mxu0 0.0
      %v1292 = vand.u32 %v784, 4294901760
      %v1293 = vsub.f32 %v784, %v1292
      %v1294 = vand.u32 %v1293, 4294901760
      %1295 = vmatmul.mubr.f32.gmra.mrb[0].mxu0 %v1294
      %v1296 = vpop.f32.mrb[0].mxu0
      %v1297 = vadd.f32 %v1192, %v1296
      %v1298 = vpop.f32.mrb[0].mxu0
      %1299 = vdwg.mxu0
      %1300 = vmatprep.subr.mxu0 0.0
      %v1301 = vand.u32 %v785, 4294901760
      %v1302 = vsub.f32 %v785, %v1301
      %v1303 = vand.u32 %v1302, 4294901760
      %1304 = vmatpush1.msra.mxu0 %v1303
      %1305 = vmatprep.subr.mxu0 0.0
      %v1306 = vand.u32 %v786, 4294901760
      %v1307 = vsub.f32 %v786, %v1306
      %v1308 = vand.u32 %v1307, 4294901760
      %1309 = vmatpush1.msra.mxu0 %v1308
      %1310 = vmatprep.subr.mxu0 0.0
      %v1311 = vand.u32 %v787, 4294901760
      %v1312 = vsub.f32 %v787, %v1311
      %v1313 = vand.u32 %v1312, 4294901760
      %1314 = vmatpush1.msra.mxu0 %v1313
      %1315 = vmatprep.subr.mxu0 0.0
      %v1316 = vand.u32 %v788, 4294901760
      %v1317 = vsub.f32 %v788, %v1316
      %v1318 = vand.u32 %v1317, 4294901760
      %1319 = vmatpush1.msra.mxu0 %v1318
      %1320 = vmatprep.subr.mxu0 0.0
      %v1321 = vand.u32 %v789, 4294901760
      %v1322 = vsub.f32 %v789, %v1321
      %v1323 = vand.u32 %v1322, 4294901760
      %1324 = vmatpush1.msra.mxu0 %v1323
      %1325 = vmatprep.subr.mxu0 0.0
      %v1326 = vand.u32 %v790, 4294901760
      %v1327 = vsub.f32 %v790, %v1326
      %v1328 = vand.u32 %v1327, 4294901760
      %1329 = vmatpush1.msra.mxu0 %v1328
      %1330 = vmatprep.subr.mxu0 0.0
      %v1331 = vand.u32 %v791, 4294901760
      %v1332 = vsub.f32 %v791, %v1331
      %v1333 = vand.u32 %v1332, 4294901760
      %1334 = vmatpush1.msra.mxu0 %v1333
      %1335 = vmatprep.subr.mxu0 0.0
      %v1336 = vand.u32 %v792, 4294901760
      %v1337 = vsub.f32 %v792, %v1336
      %v1338 = vand.u32 %v1337, 4294901760
      %1339 = vmatpush1.msra.mxu0 %v1338
      %1340 = vmatprep.subr.mxu0 0.0
      %v1341 = vand.u32 %v793, 4294901760
      %v1342 = vsub.f32 %v793, %v1341
      %v1343 = vand.u32 %v1342, 4294901760
      %1344 = vmatpush1.msra.mxu0 %v1343
      %1345 = vmatprep.subr.mxu0 0.0
      %v1346 = vand.u32 %v794, 4294901760
      %v1347 = vsub.f32 %v794, %v1346
      %v1348 = vand.u32 %v1347, 4294901760
      %1349 = vmatpush1.msra.mxu0 %v1348
      %1350 = vmatprep.subr.mxu0 0.0
      %v1351 = vand.u32 %v795, 4294901760
      %v1352 = vsub.f32 %v795, %v1351
      %v1353 = vand.u32 %v1352, 4294901760
      %1354 = vmatpush1.msra.mxu0 %v1353
      %1355 = vmatprep.subr.mxu0 0.0
      %v1356 = vand.u32 %v796, 4294901760
      %v1357 = vsub.f32 %v796, %v1356
      %v1358 = vand.u32 %v1357, 4294901760
      %1359 = vmatpush1.msra.mxu0 %v1358
      %1360 = vmatprep.subr.mxu0 0.0
      %v1361 = vand.u32 %v797, 4294901760
      %v1362 = vsub.f32 %v797, %v1361
      %v1363 = vand.u32 %v1362, 4294901760
      %1364 = vmatpush1.msra.mxu0 %v1363
      %1365 = vmatprep.subr.mxu0 0.0
      %v1366 = vand.u32 %v798, 4294901760
      %v1367 = vsub.f32 %v798, %v1366
      %v1368 = vand.u32 %v1367, 4294901760
      %1369 = vmatpush1.msra.mxu0 %v1368
      %1370 = vmatprep.subr.mxu0 0.0
      %v1371 = vand.u32 %v799, 4294901760
      %v1372 = vsub.f32 %v799, %v1371
      %v1373 = vand.u32 %v1372, 4294901760
      %1374 = vmatpush1.msra.mxu0 %v1373
      %1375 = vmatprep.subr.mxu0 0.0
      %v1376 = vand.u32 %v800, 4294901760
      %v1377 = vsub.f32 %v800, %v1376
      %v1378 = vand.u32 %v1377, 4294901760
      %1379 = vmatpush1.msra.mxu0 %v1378
      %1380 = vmatprep.subr.mxu0 0.0
      %1381 = vmatpush1.msra.mxu0 0.0
      %1382 = vmatprep.subr.mxu0 0.0
      %1383 = vmatpush1.msra.mxu0 0.0
      %1384 = vmatprep.subr.mxu0 0.0
      %1385 = vmatpush1.msra.mxu0 0.0
      %1386 = vmatprep.subr.mxu0 0.0
      %1387 = vmatpush1.msra.mxu0 0.0
      %1388 = vmatprep.subr.mxu0 0.0
      %1389 = vmatpush1.msra.mxu0 0.0
      %1390 = vmatprep.subr.mxu0 0.0
      %1391 = vmatpush1.msra.mxu0 0.0
      %1392 = vmatprep.subr.mxu0 0.0
      %1393 = vmatpush1.msra.mxu0 0.0
      %1394 = vmatprep.subr.mxu0 0.0
      %1395 = vmatpush1.msra.mxu0 0.0
      %1396 = vmatprep.subr.mxu0 0.0
      %1397 = vmatpush1.msra.mxu0 0.0
      %1398 = vmatprep.subr.mxu0 0.0
      %1399 = vmatpush1.msra.mxu0 0.0
      %1400 = vmatprep.subr.mxu0 0.0
      %1401 = vmatpush1.msra.mxu0 0.0
      %1402 = vmatprep.subr.mxu0 0.0
      %1403 = vmatpush1.msra.mxu0 0.0
      %1404 = vmatprep.subr.mxu0 0.0
      %1405 = vmatpush1.msra.mxu0 0.0
      %1406 = vmatprep.subr.mxu0 0.0
      %1407 = vmatpush1.msra.mxu0 0.0
      %1408 = vmatprep.subr.mxu0 0.0
      %1409 = vmatpush1.msra.mxu0 0.0
      %1410 = vmatprep.subr.mxu0 0.0
      %1411 = vmatpush1.msra.mxu0 0.0
      %1412 = vmatprep.mubr.f32.mxu0 0.0
      %v1413 = vand.u32 %v782, 4294901760
      %1414 = vmatmul.mubr.f32.gmra.mrb[0].mxu0 %v1413
      %v1415 = vpop.f32.mrb[0].mxu0
      %v1416 = vadd.f32 %v1281, %v1415
      %v1417 = vpop.f32.mrb[0].mxu0
      %1418 = vmatprep.mubr.f32.mxu0 0.0
      %v1419 = vand.u32 %v783, 4294901760
      %1420 = vmatmul.mubr.f32.gmra.mrb[0].mxu0 %v1419
      %v1421 = vpop.f32.mrb[0].mxu0
      %v1422 = vadd.f32 %v1289, %v1421
      %v1423 = vpop.f32.mrb[0].mxu0
      %1424 = vmatprep.mubr.f32.mxu0 0.0
      %v1425 = vand.u32 %v784, 4294901760
      %1426 = vmatmul.mubr.f32.gmra.mrb[0].mxu0 %v1425
      %v1427 = vpop.f32.mrb[0].mxu0
      %v1428 = vadd.f32 %v1297, %v1427
      %v1429 = vpop.f32.mrb[0].mxu0
      %1430 = vdwg.mxu0
      %1431 = vmatprep.subr.mxu0 0.0
      %v1432 = vand.u32 %v785, 4294901760
      %1433 = vmatpush1.msra.mxu0 %v1432
      %1434 = vmatprep.subr.mxu0 0.0
      %v1435 = vand.u32 %v786, 4294901760
      %1436 = vmatpush1.msra.mxu0 %v1435
      %1437 = vmatprep.subr.mxu0 0.0
      %v1438 = vand.u32 %v787, 4294901760
      %1439 = vmatpush1.msra.mxu0 %v1438
      %1440 = vmatprep.subr.mxu0 0.0
      %v1441 = vand.u32 %v788, 4294901760
      %1442 = vmatpush1.msra.mxu0 %v1441
      %1443 = vmatprep.subr.mxu0 0.0
      %v1444 = vand.u32 %v789, 4294901760
      %1445 = vmatpush1.msra.mxu0 %v1444
      %1446 = vmatprep.subr.mxu0 0.0
      %v1447 = vand.u32 %v790, 4294901760
      %1448 = vmatpush1.msra.mxu0 %v1447
      %1449 = vmatprep.subr.mxu0 0.0
      %v1450 = vand.u32 %v791, 4294901760
      %1451 = vmatpush1.msra.mxu0 %v1450
      %1452 = vmatprep.subr.mxu0 0.0
      %v1453 = vand.u32 %v792, 4294901760
      %1454 = vmatpush1.msra.mxu0 %v1453
      %1455 = vmatprep.subr.mxu0 0.0
      %v1456 = vand.u32 %v793, 4294901760
      %1457 = vmatpush1.msra.mxu0 %v1456
      %1458 = vmatprep.subr.mxu0 0.0
      %v1459 = vand.u32 %v794, 4294901760
      %1460 = vmatpush1.msra.mxu0 %v1459
      %1461 = vmatprep.subr.mxu0 0.0
      %v1462 = vand.u32 %v795, 4294901760
      %1463 = vmatpush1.msra.mxu0 %v1462
      %1464 = vmatprep.subr.mxu0 0.0
      %v1465 = vand.u32 %v796, 4294901760
      %1466 = vmatpush1.msra.mxu0 %v1465
      %1467 = vmatprep.subr.mxu0 0.0
      %v1468 = vand.u32 %v797, 4294901760
      %1469 = vmatpush1.msra.mxu0 %v1468
      %1470 = vmatprep.subr.mxu0 0.0
      %v1471 = vand.u32 %v798, 4294901760
      %1472 = vmatpush1.msra.mxu0 %v1471
      %1473 = vmatprep.subr.mxu0 0.0
      %v1474 = vand.u32 %v799, 4294901760
      %1475 = vmatpush1.msra.mxu0 %v1474
      %1476 = vmatprep.subr.mxu0 0.0
      %v1477 = vand.u32 %v800, 4294901760
      %1478 = vmatpush1.msra.mxu0 %v1477
      %1479 = vmatprep.subr.mxu0 0.0
      %1480 = vmatpush1.msra.mxu0 0.0
      %1481 = vmatprep.subr.mxu0 0.0
      %1482 = vmatpush1.msra.mxu0 0.0
      %1483 = vmatprep.subr.mxu0 0.0
      %1484 = vmatpush1.msra.mxu0 0.0
      %1485 = vmatprep.subr.mxu0 0.0
      %1486 = vmatpush1.msra.mxu0 0.0
      %1487 = vmatprep.subr.mxu0 0.0
      %1488 = vmatpush1.msra.mxu0 0.0
      %1489 = vmatprep.subr.mxu0 0.0
      %1490 = vmatpush1.msra.mxu0 0.0
      %1491 = vmatprep.subr.mxu0 0.0
      %1492 = vmatpush1.msra.mxu0 0.0
      %1493 = vmatprep.subr.mxu0 0.0
      %1494 = vmatpush1.msra.mxu0 0.0
      %1495 = vmatprep.subr.mxu0 0.0
      %1496 = vmatpush1.msra.mxu0 0.0
      %1497 = vmatprep.subr.mxu0 0.0
      %1498 = vmatpush1.msra.mxu0 0.0
      %1499 = vmatprep.subr.mxu0 0.0
      %1500 = vmatpush1.msra.mxu0 0.0
      %1501 = vmatprep.subr.mxu0 0.0
      %1502 = vmatpush1.msra.mxu0 0.0
      %1503 = vmatprep.subr.mxu0 0.0
      %1504 = vmatpush1.msra.mxu0 0.0
      %1505 = vmatprep.subr.mxu0 0.0
      %1506 = vmatpush1.msra.mxu0 0.0
      %1507 = vmatprep.subr.mxu0 0.0
      %1508 = vmatpush1.msra.mxu0 0.0
      %1509 = vmatprep.subr.mxu0 0.0
      %1510 = vmatpush1.msra.mxu0 0.0
      %1511 = vmatprep.mubr.f32.mxu0 0.0
      %v1512 = vand.u32 %v782, 4294901760
      %1513 = vmatmul.mubr.f32.gmra.mrb[0].mxu0 %v1512
      %v1514 = vpop.f32.mrb[0].mxu0
      %v1515 = vadd.f32 %v1416, %v1514
      %v1516 = vpop.f32.mrb[0].mxu0
      %1517 = vmatprep.mubr.f32.mxu0 0.0
      %v1518 = vand.u32 %v783, 4294901760
      %1519 = vmatmul.mubr.f32.gmra.mrb[0].mxu0 %v1518
      %v1520 = vpop.f32.mrb[0].mxu0
      %v1521 = vadd.f32 %v1422, %v1520
      %v1522 = vpop.f32.mrb[0].mxu0
      %1523 = vmatprep.mubr.f32.mxu0 0.0
      %v1524 = vand.u32 %v784, 4294901760
      %1525 = vmatmul.mubr.f32.gmra.mrb[0].mxu0 %v1524
      %v1526 = vpop.f32.mrb[0].mxu0
      %v1527 = vadd.f32 %v1428, %v1526
      %v1528 = vpop.f32.mrb[0].mxu0
      %1529 = vdwg.mxu0
      %vm1530 = vcmask 7168
      %1531 = vst.msk [vmem:[%s227] sm:$0xff] %vm1530, %v1515
      %1532 = vst.msk [vmem:[%s227 + $0x8] sm:$0xff] %vm1530, %v1521
      %1533 = vst.msk [vmem:[%s227 + $0x10] sm:$0xff] %vm1530, %v1527
      %s1534 = smul.u32 3, %s17
      %p1535 = scmp.lt.s32.totalorder %s1534, 5
      %s1536 = scalar_select %p1535, %s1534, 5
      %s1537 = smul.addr %s1536, 8
      %s1538 = scalar_lea.vmem %s5, %s1537
      // Predicated region
      $region41: #{tpu_custom_call.1} parent=39 // pred_check
        %p1539 = pneg %p145
      $region42: #{tpu_custom_call.1} parent=39 // pred_check_branch
        %1541 = sbr.rel (%p1539) target = $region44
      $region43: #{tpu_custom_call.1} parent=39 // pred_region
        %s1542 = smul.u32 3, %s17
      $region44: #{tpu_custom_call.1} parent=39 // pred_fallthru
        _
    $region40: #{tpu_custom_call.1} parent=5 // pred_fallthru
      _
    %p1543 = scmp.le.s32.totalorder 2, %s12
    // Predicated region
    $region45: #{tpu_custom_call.1} parent=5 // pred_check
      %p1544 = pneg %p1543
    $region46: #{tpu_custom_call.1} parent=5 // pred_check_branch
      %1546 = sbr.rel (%p1544) target = $region48
    $region47: #{tpu_custom_call.1} parent=5 // pred_region
      %s1547 = ssub.s32 %s12, 2
      // Predicated region
      $region49: #{tpu_custom_call.1} parent=47 // pred_check
        %p1548 = pneg %p151
      $region50: #{tpu_custom_call.1} parent=47 // pred_check_branch
        %1550 = sbr.rel (%p1548) target = $region52
      $region51: #{tpu_custom_call.1} parent=47 // pred_region
        %s1551 = smul.u32 3, %s18
        %p1552 = scmp.lt.s32.totalorder %s1551, 5
        %s1553 = scalar_select %p1552, %s1551, 5
        %s1554 = smul.addr %s1553, 8
        %s1555 = scalar_lea.vmem %s5, %s1554
      $region52: #{tpu_custom_call.1} parent=47 // pred_fallthru
        _
    $region48: #{tpu_custom_call.1} parent=5 // pred_fallthru
      _
  $region6: #{tpu_custom_call.1} parent=0 // loop_footer
    %s16 = sadd.s32 1, %s12
  $region7: #{tpu_custom_call.1} parent=0 // loop_footer_branch
    %11 = sbr.rel target = $region3
  $region8: #{tpu_custom_call.1} parent=0 // loop_exit
    _

</llo_original>
